<compile_context>
chip_gen: v6e
topology: v6e:2x2x1
jax: 0.10.0
libtpu: 0.0.40
codegen_flags: <defaults>
</compile_context>

<pallas_src>
import functools
import math

import jax
import jax.numpy as jnp
from jax.experimental import pallas as pl
from jax.experimental.pallas import tpu as pltpu


# ----------------------------------------------------------------------------
# Fused attention kernel: one grid step == one batch element.
#   x_ref   : (1, Sx, D)   query-side hidden states
#   y_ref   : (1, Sy, D)   key/value-side hidden states
#   wq/bq   : (D, D), (1, D)
#   wkv/bkv : (D, 2D), (1, 2D)     (wk | wv fused)
#   wo/bo   : (D, D), (1, D)
#   o_ref   : (1, Sx, D)
# ----------------------------------------------------------------------------
def _attention_kernel(x_ref, y_ref, wq_ref, bq_ref, wkv_ref, bkv_ref,
                      wo_ref, bo_ref, o_ref, *, num_heads, head_dim, scale):
    x = x_ref[0]                                          # (Sx, D)
    y = y_ref[0]                                          # (Sy, D)
    d_model = num_heads * head_dim

    # Projections (single full-width matmuls -> best MXU utilization here).
    q = jnp.dot(x, wq_ref[...], preferred_element_type=jnp.float32) + bq_ref[...]
    kv = jnp.dot(y, wkv_ref[...], preferred_element_type=jnp.float32) + bkv_ref[...]

    # Fold the 1/sqrt(dh) score scaling into Q once (cheaper than scaling every
    # per-head (Sx, Sy) score tile).
    q = q * scale

    # Per-head attention, statically unrolled; output projection fused per head:
    #   out = sum_h ctx_h @ Wo[h*dh:(h+1)*dh, :]  (== concat(ctx) @ Wo)
    acc = jnp.zeros((x.shape[0], d_model), jnp.float32)
    for h in range(num_heads):
        lo = h * head_dim
        hi = lo + head_dim
        q_h = q[:, lo:hi]                                 # (Sx, dh)
        k_h = kv[:, lo:hi]                                # (Sy, dh)
        v_h = kv[:, d_model + lo:d_model + hi]            # (Sy, dh)

        # scores = (Q/sqrt(dh)) K^T — contract last dims, no explicit transpose.
        s = jax.lax.dot_general(
            q_h, k_h, (((1,), (1,)), ((), ())),
            preferred_element_type=jnp.float32)           # (Sx, Sy)

        # Numerically-stable softmax; normalize the small ctx tile, not the
        # full (Sx, Sy) probability matrix.
        m = jnp.max(s, axis=-1, keepdims=True)
        e = jnp.exp(s - m)
        l = jnp.sum(e, axis=-1, keepdims=True)            # (Sx, 1)
        ctx_h = jnp.dot(e, v_h, preferred_element_type=jnp.float32)   # (Sx, dh)
        ctx_h = ctx_h * pl.reciprocal(l, approx=True)

        acc = acc + jnp.dot(ctx_h, wo_ref[lo:hi, :],
                            preferred_element_type=jnp.float32)       # (Sx, D)

    o_ref[0] = (acc + bo_ref[...]).astype(o_ref.dtype)


# ----------------------------------------------------------------------------
# Wrapper
# ----------------------------------------------------------------------------
@functools.partial(jax.jit, static_argnames=("num_heads",))
def attention_forward(params, x, y, num_heads):
    """x: (B, Sx, D), y: (B, Sy, D) -> (B, Sx, D)."""
    B, Sx, D = x.shape
    _, Sy, _ = y.shape
    dh = D // num_heads
    scale = 1.0 / math.sqrt(dh)

    # Fuse K and V projections so `y` is read once and one matmul feeds both.
    wkv = jnp.concatenate([params["wk"], params["wv"]], axis=1)   # (D, 2D)
    bkv = jnp.concatenate([params["bk"], params["bv"]], axis=1)   # (1, 2D)

    kern = functools.partial(_attention_kernel,
                             num_heads=num_heads, head_dim=dh, scale=scale)

    return pl.pallas_call(
        kern,
        out_shape=jax.ShapeDtypeStruct((B, Sx, D), x.dtype),
        grid=(B,),
        in_specs=[
            pl.BlockSpec((1, Sx, D), lambda b: (b, 0, 0)),     # x
            pl.BlockSpec((1, Sy, D), lambda b: (b, 0, 0)),     # y
            pl.BlockSpec((D, D), lambda b: (0, 0)),            # wq
            pl.BlockSpec((1, D), lambda b: (0, 0)),            # bq
            pl.BlockSpec((D, 2 * D), lambda b: (0, 0)),        # wkv
            pl.BlockSpec((1, 2 * D), lambda b: (0, 0)),        # bkv
            pl.BlockSpec((D, D), lambda b: (0, 0)),            # wo
            pl.BlockSpec((1, D), lambda b: (0, 0)),            # bo
        ],
        out_specs=pl.BlockSpec((1, Sx, D), lambda b: (b, 0, 0)),
        compiler_params=pltpu.CompilerParams(
            dimension_semantics=("parallel",)),                # batch across TCs
    )(x, y, params["wq"], params["bq"], wkv, bkv, params["wo"], params["bo"])


# ----------------------------------------------------------------------------
# Deterministic synthetic parameters (nn.Linear-style, stored as (in, out)).
# ----------------------------------------------------------------------------
def init_attention_params(key, embed_dim):
    keys = jax.random.split(key, 8)
    s = 1.0 / math.sqrt(embed_dim)

    def w(k):
        return jax.random.uniform(k, (embed_dim, embed_dim), jnp.float32, -s, s)

    def b(k):
        return jax.random.uniform(k, (1, embed_dim), jnp.float32, -s, s)

    return {
        "wq": w(keys[0]), "bq": b(keys[1]),
        "wk": w(keys[2]), "bk": b(keys[3]),
        "wv": w(keys[4]), "bv": b(keys[5]),
        "wo": w(keys[6]), "bo": b(keys[7]),
    }


# ----------------------------------------------------------------------------
# Pure-JAX reference (sanity check).
# ----------------------------------------------------------------------------
def attention_ref(params, x, y, num_heads):
    B, Sx, D = x.shape
    _, Sy, _ = y.shape
    dh = D // num_heads
    q = (x.reshape(B * Sx, D) @ params["wq"] + params["bq"]).reshape(
        B, Sx, num_heads, dh).transpose(0, 2, 1, 3)
    k = (y.reshape(B * Sy, D) @ params["wk"] + params["bk"]).reshape(
        B, Sy, num_heads, dh).transpose(0, 2, 1, 3)
    v = (y.reshape(B * Sy, D) @ params["wv"] + params["bv"]).reshape(
        B, Sy, num_heads, dh).transpose(0, 2, 1, 3)
    s = jnp.einsum("bhqd,bhkd->bhqk", q, k) / math.sqrt(dh)
    p = jax.nn.softmax(s, axis=-1)
    ctx = jnp.einsum("bhqk,bhkd->bhqd", p, v).transpose(0, 2, 1, 3).reshape(B * Sx, D)
    return (ctx @ params["wo"] + params["bo"]).reshape(B, Sx, D)


if __name__ == "__main__":
    # Small config consistent with the module: embed_dim=32, num_head=4.
    B, Sx, Sy, D, H = 2, 8, 8, 32, 4

    key = jax.random.PRNGKey(0)
    kp, kx, ky = jax.random.split(key, 3)
    params = init_attention_params(kp, D)
    x = jax.random.normal(kx, (B, Sx, D), jnp.float32)
    y = jax.random.normal(ky, (B, Sy, D), jnp.float32)

    out = attention_forward(params, x, y, H)
    out = jax.block_until_ready(out)

    ref = attention_ref(params, x, y, H)
    assert out.shape == (B, Sx, D)
    # Slightly relaxed tolerance: approx reciprocal (EUP estimate) in the kernel.
    assert jnp.allclose(out, ref, atol=5e-3, rtol=5e-3), float(
        jnp.max(jnp.abs(out - ref)))

    print("KERNEL_OK")
</pallas_src>

<mosaic_0001>
module attributes {stable_mosaic.version = 11 : i64} {
  func.func @_attention_kernel(%arg0: i32, %arg1: memref<1x8x32xf32, #tpu.memory_space<vmem>>, %arg2: memref<1x8x32xf32, #tpu.memory_space<vmem>>, %arg3: memref<32x32xf32, #tpu.memory_space<vmem>>, %arg4: memref<1x32xf32, #tpu.memory_space<vmem>>, %arg5: memref<32x64xf32, #tpu.memory_space<vmem>>, %arg6: memref<1x64xf32, #tpu.memory_space<vmem>>, %arg7: memref<32x32xf32, #tpu.memory_space<vmem>>, %arg8: memref<1x32xf32, #tpu.memory_space<vmem>>, %arg9: memref<1x8x32xf32, #tpu.memory_space<vmem>>) attributes {dimension_semantics = [#tpu.dimension_semantics<parallel>], iteration_bounds = array<i64: 2>, scalar_prefetch = 0 : i64, scratch_operands = 0 : i64, tpu.core_type = #tpu.core_type<tc>, window_params = [{transform_indices = @transform_0, window_bounds = array<i64: 1, 8, 32>}, {transform_indices = @transform_1, window_bounds = array<i64: 1, 8, 32>}, {pipeline_mode = #tpu.pipeline_mode<synchronous>, transform_indices = @transform_2, window_bounds = array<i64: 32, 32>}, {pipeline_mode = #tpu.pipeline_mode<synchronous>, transform_indices = @transform_3, window_bounds = array<i64: 1, 32>}, {pipeline_mode = #tpu.pipeline_mode<synchronous>, transform_indices = @transform_4, window_bounds = array<i64: 32, 64>}, {pipeline_mode = #tpu.pipeline_mode<synchronous>, transform_indices = @transform_5, window_bounds = array<i64: 1, 64>}, {pipeline_mode = #tpu.pipeline_mode<synchronous>, transform_indices = @transform_6, window_bounds = array<i64: 32, 32>}, {pipeline_mode = #tpu.pipeline_mode<synchronous>, transform_indices = @transform_7, window_bounds = array<i64: 1, 32>}, {transform_indices = @transform_8, window_bounds = array<i64: 1, 8, 32>}]} {
    %c0 = arith.constant 0 : index
    %c0_0 = arith.constant 0 : index
    %c0_1 = arith.constant 0 : index
    %0 = vector.load %arg1[%c0, %c0_0, %c0_1] : memref<1x8x32xf32, #tpu.memory_space<vmem>>, vector<1x8x32xf32>
    %1 = vector.shape_cast %0 : vector<1x8x32xf32> to vector<8x32xf32>
    %c0_2 = arith.constant 0 : index
    %c0_3 = arith.constant 0 : index
    %c0_4 = arith.constant 0 : index
    %2 = vector.load %arg2[%c0_2, %c0_3, %c0_4] : memref<1x8x32xf32, #tpu.memory_space<vmem>>, vector<1x8x32xf32>
    %3 = vector.shape_cast %2 : vector<1x8x32xf32> to vector<8x32xf32>
    %c0_5 = arith.constant 0 : index
    %c0_6 = arith.constant 0 : index
    %4 = vector.load %arg3[%c0_5, %c0_6] : memref<32x32xf32, #tpu.memory_space<vmem>>, vector<32x32xf32>
    %cst = arith.constant dense<0.000000e+00> : vector<8x32xf32>
    %5 = tpu.matmul %1, %4, %cst {dimension_numbers = #tpu.dot_dimension_numbers<[1], [0], [0], [1], [0, 0, 1, 1], [], []>} : vector<8x32xf32>, vector<32x32xf32>, vector<8x32xf32> -> vector<8x32xf32>
    %c0_7 = arith.constant 0 : index
    %c0_8 = arith.constant 0 : index
    %6 = vector.load %arg4[%c0_7, %c0_8] : memref<1x32xf32, #tpu.memory_space<vmem>>, vector<1x32xf32>
    %7 = vector.broadcast %6 : vector<1x32xf32> to vector<8x32xf32>
    %8 = arith.addf %5, %7 : vector<8x32xf32>
    %c0_9 = arith.constant 0 : index
    %c0_10 = arith.constant 0 : index
    %9 = vector.load %arg5[%c0_9, %c0_10] : memref<32x64xf32, #tpu.memory_space<vmem>>, vector<32x64xf32>
    %cst_11 = arith.constant dense<0.000000e+00> : vector<8x64xf32>
    %10 = tpu.matmul %3, %9, %cst_11 {dimension_numbers = #tpu.dot_dimension_numbers<[1], [0], [0], [1], [0, 0, 1, 1], [], []>} : vector<8x32xf32>, vector<32x64xf32>, vector<8x64xf32> -> vector<8x64xf32>
    %c0_12 = arith.constant 0 : index
    %c0_13 = arith.constant 0 : index
    %11 = vector.load %arg6[%c0_12, %c0_13] : memref<1x64xf32, #tpu.memory_space<vmem>>, vector<1x64xf32>
    %12 = vector.broadcast %11 : vector<1x64xf32> to vector<8x64xf32>
    %13 = arith.addf %10, %12 : vector<8x64xf32>
    %cst_14 = arith.constant 0.353553385 : f32
    %14 = vector.broadcast %cst_14 : f32 to vector<8x32xf32>
    %15 = arith.mulf %8, %14 : vector<8x32xf32>
    %cst_15 = arith.constant 0.000000e+00 : f32
    %16 = vector.broadcast %cst_15 : f32 to vector<8x32xf32>
    %17 = vector.extract_strided_slice %15 {offsets = [0, 0], sizes = [8, 8], strides = [1, 1]} : vector<8x32xf32> to vector<8x8xf32>
    %18 = vector.extract_strided_slice %13 {offsets = [0, 0], sizes = [8, 8], strides = [1, 1]} : vector<8x64xf32> to vector<8x8xf32>
    %19 = vector.extract_strided_slice %13 {offsets = [0, 32], sizes = [8, 8], strides = [1, 1]} : vector<8x64xf32> to vector<8x8xf32>
    %cst_16 = arith.constant dense<0.000000e+00> : vector<8x8xf32>
    %20 = tpu.matmul %17, %18, %cst_16 {dimension_numbers = #tpu.dot_dimension_numbers<[1], [1], [0], [0], [0, 0, 1, 0], [], []>} : vector<8x8xf32>, vector<8x8xf32>, vector<8x8xf32> -> vector<8x8xf32>
    %cst_17 = arith.constant dense<0xFF800000> : vector<8xf32>
    %21 = vector.multi_reduction <maximumf>, %20, %cst_17 [1] : vector<8x8xf32> to vector<8xf32>
    %22 = vector.shape_cast %21 : vector<8xf32> to vector<8x1xf32>
    %23 = vector.broadcast %22 : vector<8x1xf32> to vector<8x8xf32>
    %24 = arith.subf %20, %23 : vector<8x8xf32>
    %25 = math.exp %24 : vector<8x8xf32>
    %cst_18 = arith.constant dense<0.000000e+00> : vector<8xf32>
    %26 = vector.multi_reduction <add>, %25, %cst_18 [1] : vector<8x8xf32> to vector<8xf32>
    %27 = vector.shape_cast %26 : vector<8xf32> to vector<8x1xf32>
    %cst_19 = arith.constant dense<0.000000e+00> : vector<8x8xf32>
    %28 = tpu.matmul %25, %19, %cst_19 {dimension_numbers = #tpu.dot_dimension_numbers<[1], [0], [0], [1], [0, 0, 1, 1], [], []>} : vector<8x8xf32>, vector<8x8xf32>, vector<8x8xf32> -> vector<8x8xf32>
    %29 = tpu.reciprocal %27 {approx = true} : vector<8x1xf32> -> vector<8x1xf32>
    %30 = vector.broadcast %29 : vector<8x1xf32> to vector<8x8xf32>
    %31 = arith.mulf %28, %30 : vector<8x8xf32>
    %c0_20 = arith.constant 0 : index
    %c0_21 = arith.constant 0 : index
    %32 = vector.load %arg7[%c0_20, %c0_21] : memref<32x32xf32, #tpu.memory_space<vmem>>, vector<8x32xf32>
    %cst_22 = arith.constant dense<0.000000e+00> : vector<8x32xf32>
    %33 = tpu.matmul %31, %32, %cst_22 {dimension_numbers = #tpu.dot_dimension_numbers<[1], [0], [0], [1], [0, 0, 1, 1], [], []>} : vector<8x8xf32>, vector<8x32xf32>, vector<8x32xf32> -> vector<8x32xf32>
    %34 = arith.addf %16, %33 : vector<8x32xf32>
    %35 = vector.extract_strided_slice %15 {offsets = [0, 8], sizes = [8, 8], strides = [1, 1]} : vector<8x32xf32> to vector<8x8xf32>
    %36 = vector.extract_strided_slice %13 {offsets = [0, 8], sizes = [8, 8], strides = [1, 1]} : vector<8x64xf32> to vector<8x8xf32>
    %37 = vector.extract_strided_slice %13 {offsets = [0, 40], sizes = [8, 8], strides = [1, 1]} : vector<8x64xf32> to vector<8x8xf32>
    %cst_23 = arith.constant dense<0.000000e+00> : vector<8x8xf32>
    %38 = tpu.matmul %35, %36, %cst_23 {dimension_numbers = #tpu.dot_dimension_numbers<[1], [1], [0], [0], [0, 0, 1, 0], [], []>} : vector<8x8xf32>, vector<8x8xf32>, vector<8x8xf32> -> vector<8x8xf32>
    %cst_24 = arith.constant dense<0xFF800000> : vector<8xf32>
    %39 = vector.multi_reduction <maximumf>, %38, %cst_24 [1] : vector<8x8xf32> to vector<8xf32>
    %40 = vector.shape_cast %39 : vector<8xf32> to vector<8x1xf32>
    %41 = vector.broadcast %40 : vector<8x1xf32> to vector<8x8xf32>
    %42 = arith.subf %38, %41 : vector<8x8xf32>
    %43 = math.exp %42 : vector<8x8xf32>
    %cst_25 = arith.constant dense<0.000000e+00> : vector<8xf32>
    %44 = vector.multi_reduction <add>, %43, %cst_25 [1] : vector<8x8xf32> to vector<8xf32>
    %45 = vector.shape_cast %44 : vector<8xf32> to vector<8x1xf32>
    %cst_26 = arith.constant dense<0.000000e+00> : vector<8x8xf32>
    %46 = tpu.matmul %43, %37, %cst_26 {dimension_numbers = #tpu.dot_dimension_numbers<[1], [0], [0], [1], [0, 0, 1, 1], [], []>} : vector<8x8xf32>, vector<8x8xf32>, vector<8x8xf32> -> vector<8x8xf32>
    %47 = tpu.reciprocal %45 {approx = true} : vector<8x1xf32> -> vector<8x1xf32>
    %48 = vector.broadcast %47 : vector<8x1xf32> to vector<8x8xf32>
    %49 = arith.mulf %46, %48 : vector<8x8xf32>
    %c8 = arith.constant 8 : index
    %c0_27 = arith.constant 0 : index
    %50 = vector.load %arg7[%c8, %c0_27] : memref<32x32xf32, #tpu.memory_space<vmem>>, vector<8x32xf32>
    %cst_28 = arith.constant dense<0.000000e+00> : vector<8x32xf32>
    %51 = tpu.matmul %49, %50, %cst_28 {dimension_numbers = #tpu.dot_dimension_numbers<[1], [0], [0], [1], [0, 0, 1, 1], [], []>} : vector<8x8xf32>, vector<8x32xf32>, vector<8x32xf32> -> vector<8x32xf32>
    %52 = arith.addf %34, %51 : vector<8x32xf32>
    %53 = vector.extract_strided_slice %15 {offsets = [0, 16], sizes = [8, 8], strides = [1, 1]} : vector<8x32xf32> to vector<8x8xf32>
    %54 = vector.extract_strided_slice %13 {offsets = [0, 16], sizes = [8, 8], strides = [1, 1]} : vector<8x64xf32> to vector<8x8xf32>
    %55 = vector.extract_strided_slice %13 {offsets = [0, 48], sizes = [8, 8], strides = [1, 1]} : vector<8x64xf32> to vector<8x8xf32>
    %cst_29 = arith.constant dense<0.000000e+00> : vector<8x8xf32>
    %56 = tpu.matmul %53, %54, %cst_29 {dimension_numbers = #tpu.dot_dimension_numbers<[1], [1], [0], [0], [0, 0, 1, 0], [], []>} : vector<8x8xf32>, vector<8x8xf32>, vector<8x8xf32> -> vector<8x8xf32>
    %cst_30 = arith.constant dense<0xFF800000> : vector<8xf32>
    %57 = vector.multi_reduction <maximumf>, %56, %cst_30 [1] : vector<8x8xf32> to vector<8xf32>
    %58 = vector.shape_cast %57 : vector<8xf32> to vector<8x1xf32>
    %59 = vector.broadcast %58 : vector<8x1xf32> to vector<8x8xf32>
    %60 = arith.subf %56, %59 : vector<8x8xf32>
    %61 = math.exp %60 : vector<8x8xf32>
    %cst_31 = arith.constant dense<0.000000e+00> : vector<8xf32>
    %62 = vector.multi_reduction <add>, %61, %cst_31 [1] : vector<8x8xf32> to vector<8xf32>
    %63 = vector.shape_cast %62 : vector<8xf32> to vector<8x1xf32>
    %cst_32 = arith.constant dense<0.000000e+00> : vector<8x8xf32>
    %64 = tpu.matmul %61, %55, %cst_32 {dimension_numbers = #tpu.dot_dimension_numbers<[1], [0], [0], [1], [0, 0, 1, 1], [], []>} : vector<8x8xf32>, vector<8x8xf32>, vector<8x8xf32> -> vector<8x8xf32>
    %65 = tpu.reciprocal %63 {approx = true} : vector<8x1xf32> -> vector<8x1xf32>
    %66 = vector.broadcast %65 : vector<8x1xf32> to vector<8x8xf32>
    %67 = arith.mulf %64, %66 : vector<8x8xf32>
    %c16 = arith.constant 16 : index
    %c0_33 = arith.constant 0 : index
    %68 = vector.load %arg7[%c16, %c0_33] : memref<32x32xf32, #tpu.memory_space<vmem>>, vector<8x32xf32>
    %cst_34 = arith.constant dense<0.000000e+00> : vector<8x32xf32>
    %69 = tpu.matmul %67, %68, %cst_34 {dimension_numbers = #tpu.dot_dimension_numbers<[1], [0], [0], [1], [0, 0, 1, 1], [], []>} : vector<8x8xf32>, vector<8x32xf32>, vector<8x32xf32> -> vector<8x32xf32>
    %70 = arith.addf %52, %69 : vector<8x32xf32>
    %71 = vector.extract_strided_slice %15 {offsets = [0, 24], sizes = [8, 8], strides = [1, 1]} : vector<8x32xf32> to vector<8x8xf32>
    %72 = vector.extract_strided_slice %13 {offsets = [0, 24], sizes = [8, 8], strides = [1, 1]} : vector<8x64xf32> to vector<8x8xf32>
    %73 = vector.extract_strided_slice %13 {offsets = [0, 56], sizes = [8, 8], strides = [1, 1]} : vector<8x64xf32> to vector<8x8xf32>
    %cst_35 = arith.constant dense<0.000000e+00> : vector<8x8xf32>
    %74 = tpu.matmul %71, %72, %cst_35 {dimension_numbers = #tpu.dot_dimension_numbers<[1], [1], [0], [0], [0, 0, 1, 0], [], []>} : vector<8x8xf32>, vector<8x8xf32>, vector<8x8xf32> -> vector<8x8xf32>
    %cst_36 = arith.constant dense<0xFF800000> : vector<8xf32>
    %75 = vector.multi_reduction <maximumf>, %74, %cst_36 [1] : vector<8x8xf32> to vector<8xf32>
    %76 = vector.shape_cast %75 : vector<8xf32> to vector<8x1xf32>
    %77 = vector.broadcast %76 : vector<8x1xf32> to vector<8x8xf32>
    %78 = arith.subf %74, %77 : vector<8x8xf32>
    %79 = math.exp %78 : vector<8x8xf32>
    %cst_37 = arith.constant dense<0.000000e+00> : vector<8xf32>
    %80 = vector.multi_reduction <add>, %79, %cst_37 [1] : vector<8x8xf32> to vector<8xf32>
    %81 = vector.shape_cast %80 : vector<8xf32> to vector<8x1xf32>
    %cst_38 = arith.constant dense<0.000000e+00> : vector<8x8xf32>
    %82 = tpu.matmul %79, %73, %cst_38 {dimension_numbers = #tpu.dot_dimension_numbers<[1], [0], [0], [1], [0, 0, 1, 1], [], []>} : vector<8x8xf32>, vector<8x8xf32>, vector<8x8xf32> -> vector<8x8xf32>
    %83 = tpu.reciprocal %81 {approx = true} : vector<8x1xf32> -> vector<8x1xf32>
    %84 = vector.broadcast %83 : vector<8x1xf32> to vector<8x8xf32>
    %85 = arith.mulf %82, %84 : vector<8x8xf32>
    %c24 = arith.constant 24 : index
    %c0_39 = arith.constant 0 : index
    %86 = vector.load %arg7[%c24, %c0_39] : memref<32x32xf32, #tpu.memory_space<vmem>>, vector<8x32xf32>
    %cst_40 = arith.constant dense<0.000000e+00> : vector<8x32xf32>
    %87 = tpu.matmul %85, %86, %cst_40 {dimension_numbers = #tpu.dot_dimension_numbers<[1], [0], [0], [1], [0, 0, 1, 1], [], []>} : vector<8x8xf32>, vector<8x32xf32>, vector<8x32xf32> -> vector<8x32xf32>
    %88 = arith.addf %70, %87 : vector<8x32xf32>
    %c0_41 = arith.constant 0 : index
    %c0_42 = arith.constant 0 : index
    %89 = vector.load %arg8[%c0_41, %c0_42] : memref<1x32xf32, #tpu.memory_space<vmem>>, vector<1x32xf32>
    %90 = vector.broadcast %89 : vector<1x32xf32> to vector<8x32xf32>
    %91 = arith.addf %88, %90 : vector<8x32xf32>
    %c0_43 = arith.constant 0 : index
    %c0_44 = arith.constant 0 : index
    %c0_45 = arith.constant 0 : index
    %92 = vector.load %arg9[%c0_43, %c0_44, %c0_45] : memref<1x8x32xf32, #tpu.memory_space<vmem>>, vector<1x8x32xf32>
    %93 = vector.shape_cast %92 : vector<1x8x32xf32> to vector<8x32xf32>
    %94 = vector.shape_cast %91 : vector<8x32xf32> to vector<1x8x32xf32>
    tpu.vector_store %arg9[%c0_43, %c0_44, %c0_45], %94 {strides = array<i32>} : memref<1x8x32xf32, #tpu.memory_space<vmem>>, vector<1x8x32xf32>,
    return
  }
  func.func @transform_0(%arg0: i32) -> (i32, i32, i32) {
    %c0_i32 = arith.constant 0 : i32
    %c0_i32_0 = arith.constant 0 : i32
    %c0_i32_1 = arith.constant 0 : i32
    return %arg0, %c0_i32, %c0_i32_0 : i32, i32, i32
  }
  func.func @transform_1(%arg0: i32) -> (i32, i32, i32) {
    %c0_i32 = arith.constant 0 : i32
    %c0_i32_0 = arith.constant 0 : i32
    %c0_i32_1 = arith.constant 0 : i32
    return %arg0, %c0_i32, %c0_i32_0 : i32, i32, i32
  }
  func.func @transform_2(%arg0: i32) -> (i32, i32) {
    %c0_i32 = arith.constant 0 : i32
    %c0_i32_0 = arith.constant 0 : i32
    %c0_i32_1 = arith.constant 0 : i32
    return %c0_i32, %c0_i32_0 : i32, i32
  }
  func.func @transform_3(%arg0: i32) -> (i32, i32) {
    %c0_i32 = arith.constant 0 : i32
    %c0_i32_0 = arith.constant 0 : i32
    %c0_i32_1 = arith.constant 0 : i32
    return %c0_i32, %c0_i32_0 : i32, i32
  }
  func.func @transform_4(%arg0: i32) -> (i32, i32) {
    %c0_i32 = arith.constant 0 : i32
    %c0_i32_0 = arith.constant 0 : i32
    %c0_i32_1 = arith.constant 0 : i32
    return %c0_i32, %c0_i32_0 : i32, i32
  }
  func.func @transform_5(%arg0: i32) -> (i32, i32) {
    %c0_i32 = arith.constant 0 : i32
    %c0_i32_0 = arith.constant 0 : i32
    %c0_i32_1 = arith.constant 0 : i32
    return %c0_i32, %c0_i32_0 : i32, i32
  }
  func.func @transform_6(%arg0: i32) -> (i32, i32) {
    %c0_i32 = arith.constant 0 : i32
    %c0_i32_0 = arith.constant 0 : i32
    %c0_i32_1 = arith.constant 0 : i32
    return %c0_i32, %c0_i32_0 : i32, i32
  }
  func.func @transform_7(%arg0: i32) -> (i32, i32) {
    %c0_i32 = arith.constant 0 : i32
    %c0_i32_0 = arith.constant 0 : i32
    %c0_i32_1 = arith.constant 0 : i32
    return %c0_i32, %c0_i32_0 : i32, i32
  }
  func.func @transform_8(%arg0: i32) -> (i32, i32, i32) {
    %c0_i32 = arith.constant 0 : i32
    %c0_i32_0 = arith.constant 0 : i32
    %c0_i32_1 = arith.constant 0 : i32
    return %arg0, %c0_i32, %c0_i32_0 : i32, i32, i32
  }
}

</mosaic_0001>

<llo_original>
// kernel: attention_forward.1
$region0: #{attention_forward.1}
  #allocation0 [shape = 'u32[]', space=smem, size = 0x4, offset = 0x4, fixed_abs, tag = 'smem constant byte address 0x4 - core index']
  #allocation1 [shape = 'u32[144,128]{1,0:T(1,128)}', space=vmem, size = 0x12000, scoped, tag = 'internal scratch']
  %s0 = inlined_call_operand.vmem [shape: f32[2,8,32], index: 0, kind: input, shape index: {}]
  %s1 = inlined_call_operand.vmem [shape: f32[2,8,32], index: 1, kind: input, shape index: {}]
  %s2 = inlined_call_operand.vmem [shape: f32[32,32], index: 2, kind: input, shape index: {}]
  %s3 = inlined_call_operand.vmem [shape: f32[1,32], index: 3, kind: input, shape index: {}]
  %s4 = inlined_call_operand.vmem [shape: f32[32,64], index: 4, kind: input, shape index: {}]
  %s5 = inlined_call_operand.vmem [shape: f32[1,64], index: 5, kind: input, shape index: {}]
  %s6 = inlined_call_operand.vmem [shape: f32[32,32], index: 6, kind: input, shape index: {}]
  %s7 = inlined_call_operand.vmem [shape: f32[1,32], index: 7, kind: input, shape index: {}]
  %s8 = inlined_call_operand.hbm [shape: f32[2,8,32], index: 8, kind: output, shape index: {}]
  %s9 = sld [smem:[#allocation0]]
  $region65: #{attention_forward.1} parent=0
    _
  %s11 = ssub.s32 1, %s9
  %s12 = scalar_select 0, %s11, %s9
  $region1: #{attention_forward.1} parent=0
    #allocation2 [shape = 'u8[8192]{0}', space=vmem, size = 0x2000, scoped, tag = 'output window, operand 0']
    #allocation3 [shape = 's32[2]{0}', space=sflag, size = 0x8, scoped, tag = 'scoped memory for attention_forward.1']
    %13 = vsyncpa [#allocation3], 0
    %s14 = scalar_lea.sflag [#allocation3], 1
    %15 = vsyncpa %s14, 0
    loop: start=0, step=1, limit=4
    $region2: #{attention_forward.1} parent=1 // loop_pre_header
      _
    $region3: #{attention_forward.1} parent=1 // loop_header
      %s17 = sphi 0, %s21
      %p18 = scmp.ge.s32.totalorder %s17, 4
      %s27 = sphi 0, %s29
      %s30 = sphi 0, %s27
      %s31 = sphi 0, %s30
      %s47 = sphi 0, %s31
      %s53 = sphi 0, %s55
      %s56 = sphi 0, %s53
      %s57 = sphi 0, %s56
      %s73 = sphi 0, %s57
      %s77 = sphi 0, %s77
      %s79 = sphi 0, %s77
      %s80 = sphi 0, %s79
      %s94 = sphi 0, %s80
      %s98 = sphi 0, %s98
      %s100 = sphi 0, %s98
      %s101 = sphi 0, %s100
      %s115 = sphi 0, %s101
      %s119 = sphi 0, %s119
      %s121 = sphi 0, %s119
      %s122 = sphi 0, %s121
      %s136 = sphi 0, %s122
      %s140 = sphi 0, %s140
      %s142 = sphi 0, %s140
      %s143 = sphi 0, %s142
      %s157 = sphi 0, %s143
      %s161 = sphi 0, %s161
      %s163 = sphi 0, %s161
      %s164 = sphi 0, %s163
      %s178 = sphi 0, %s164
      %s182 = sphi 0, %s182
      %s184 = sphi 0, %s182
      %s185 = sphi 0, %s184
      %s199 = sphi 0, %s185
      %s205 = sphi 0, %s207
      %s208 = sphi 0, %s205
      %s209 = sphi 0, %s208
      %s225 = sphi 0, %s209
    $region4: #{attention_forward.1} parent=1 // loop_header_branch
      %20 = sbr.rel (%p18) target = $region8
    $region5: #{attention_forward.1} parent=1 // loop_body
      %s22 = ssub.s32 %s17, 1
      %s23 = ssub.s32 %s17, 2
      %s24 = sadd.s32 %s17, 1
      %s25 = ssub.s32 %s17, %s24
      %p26 = scmp.eq.s32.totalorder %s25, 0
      %s28 = sadd.s32 %s27, 1
      %s29 = scalar_select %p26, %s27, %s28
      %p32 = pneg %p26
      %p33 = scmp.eq.s32.totalorder %s17, 1
      %p34 = por %p32, %p33
      %p35 = scmp.ne.s32.totalorder %s27, %s30
      %p36 = scmp.eq.s32.totalorder %s17, 0
      %p37 = por %p35, %p36
      %p38 = scmp.ne.s32.totalorder %s27, %s30
      %p39 = scmp.eq.s32.totalorder %s22, 1
      %p40 = por %p38, %p39
      %p41 = scmp.ne.s32.totalorder %s30, %s31
      %p42 = scmp.eq.s32.totalorder %s22, 0
      %p43 = por %p41, %p42
      %p44 = scmp.ne.s32.totalorder %s30, %s31
      %p45 = scmp.eq.s32.totalorder %s23, 1
      %p46 = por %p44, %p45
      %p48 = scmp.ne.s32.totalorder %s31, %s47
      %p49 = scmp.eq.s32.totalorder %s23, 0
      %p50 = por %p48, %p49
      %s51 = ssub.s32 %s17, %s24
      %p52 = scmp.eq.s32.totalorder %s51, 0
      %s54 = sadd.s32 %s53, 1
      %s55 = scalar_select %p52, %s53, %s54
      %p58 = pneg %p52
      %p59 = scmp.eq.s32.totalorder %s17, 1
      %p60 = por %p58, %p59
      %p61 = scmp.ne.s32.totalorder %s53, %s56
      %p62 = scmp.eq.s32.totalorder %s17, 0
      %p63 = por %p61, %p62
      %p64 = scmp.ne.s32.totalorder %s53, %s56
      %p65 = scmp.eq.s32.totalorder %s22, 1
      %p66 = por %p64, %p65
      %p67 = scmp.ne.s32.totalorder %s56, %s57
      %p68 = scmp.eq.s32.totalorder %s22, 0
      %p69 = por %p67, %p68
      %p70 = scmp.ne.s32.totalorder %s56, %s57
      %p71 = scmp.eq.s32.totalorder %s23, 1
      %p72 = por %p70, %p71
      %p74 = scmp.ne.s32.totalorder %s57, %s73
      %p75 = scmp.eq.s32.totalorder %s23, 0
      %p76 = por %p74, %p75
      %s78 = sadd.s32 %s77, 1
      %p81 = scmp.eq.s32.totalorder %s17, 1
      %p82 = scmp.ne.s32.totalorder %s77, %s79
      %p83 = scmp.eq.s32.totalorder %s17, 0
      %p84 = por %p82, %p83
      %p85 = scmp.ne.s32.totalorder %s77, %s79
      %p86 = scmp.eq.s32.totalorder %s22, 1
      %p87 = por %p85, %p86
      %p88 = scmp.ne.s32.totalorder %s79, %s80
      %p89 = scmp.eq.s32.totalorder %s22, 0
      %p90 = por %p88, %p89
      %p91 = scmp.ne.s32.totalorder %s79, %s80
      %p92 = scmp.eq.s32.totalorder %s23, 1
      %p93 = por %p91, %p92
      %p95 = scmp.ne.s32.totalorder %s80, %s94
      %p96 = scmp.eq.s32.totalorder %s23, 0
      %p97 = por %p95, %p96
      %s99 = sadd.s32 %s98, 1
      %p102 = scmp.eq.s32.totalorder %s17, 1
      %p103 = scmp.ne.s32.totalorder %s98, %s100
      %p104 = scmp.eq.s32.totalorder %s17, 0
      %p105 = por %p103, %p104
      %p106 = scmp.ne.s32.totalorder %s98, %s100
      %p107 = scmp.eq.s32.totalorder %s22, 1
      %p108 = por %p106, %p107
      %p109 = scmp.ne.s32.totalorder %s100, %s101
      %p110 = scmp.eq.s32.totalorder %s22, 0
      %p111 = por %p109, %p110
      %p112 = scmp.ne.s32.totalorder %s100, %s101
      %p113 = scmp.eq.s32.totalorder %s23, 1
      %p114 = por %p112, %p113
      %p116 = scmp.ne.s32.totalorder %s101, %s115
      %p117 = scmp.eq.s32.totalorder %s23, 0
      %p118 = por %p116, %p117
      %s120 = sadd.s32 %s119, 1
      %p123 = scmp.eq.s32.totalorder %s17, 1
      %p124 = scmp.ne.s32.totalorder %s119, %s121
      %p125 = scmp.eq.s32.totalorder %s17, 0
      %p126 = por %p124, %p125
      %p127 = scmp.ne.s32.totalorder %s119, %s121
      %p128 = scmp.eq.s32.totalorder %s22, 1
      %p129 = por %p127, %p128
      %p130 = scmp.ne.s32.totalorder %s121, %s122
      %p131 = scmp.eq.s32.totalorder %s22, 0
      %p132 = por %p130, %p131
      %p133 = scmp.ne.s32.totalorder %s121, %s122
      %p134 = scmp.eq.s32.totalorder %s23, 1
      %p135 = por %p133, %p134
      %p137 = scmp.ne.s32.totalorder %s122, %s136
      %p138 = scmp.eq.s32.totalorder %s23, 0
      %p139 = por %p137, %p138
      %s141 = sadd.s32 %s140, 1
      %p144 = scmp.eq.s32.totalorder %s17, 1
      %p145 = scmp.ne.s32.totalorder %s140, %s142
      %p146 = scmp.eq.s32.totalorder %s17, 0
      %p147 = por %p145, %p146
      %p148 = scmp.ne.s32.totalorder %s140, %s142
      %p149 = scmp.eq.s32.totalorder %s22, 1
      %p150 = por %p148, %p149
      %p151 = scmp.ne.s32.totalorder %s142, %s143
      %p152 = scmp.eq.s32.totalorder %s22, 0
      %p153 = por %p151, %p152
      %p154 = scmp.ne.s32.totalorder %s142, %s143
      %p155 = scmp.eq.s32.totalorder %s23, 1
      %p156 = por %p154, %p155
      %p158 = scmp.ne.s32.totalorder %s143, %s157
      %p159 = scmp.eq.s32.totalorder %s23, 0
      %p160 = por %p158, %p159
      %s162 = sadd.s32 %s161, 1
      %p165 = scmp.eq.s32.totalorder %s17, 1
      %p166 = scmp.ne.s32.totalorder %s161, %s163
      %p167 = scmp.eq.s32.totalorder %s17, 0
      %p168 = por %p166, %p167
      %p169 = scmp.ne.s32.totalorder %s161, %s163
      %p170 = scmp.eq.s32.totalorder %s22, 1
      %p171 = por %p169, %p170
      %p172 = scmp.ne.s32.totalorder %s163, %s164
      %p173 = scmp.eq.s32.totalorder %s22, 0
      %p174 = por %p172, %p173
      %p175 = scmp.ne.s32.totalorder %s163, %s164
      %p176 = scmp.eq.s32.totalorder %s23, 1
      %p177 = por %p175, %p176
      %p179 = scmp.ne.s32.totalorder %s164, %s178
      %p180 = scmp.eq.s32.totalorder %s23, 0
      %p181 = por %p179, %p180
      %s183 = sadd.s32 %s182, 1
      %p186 = scmp.eq.s32.totalorder %s17, 1
      %p187 = scmp.ne.s32.totalorder %s182, %s184
      %p188 = scmp.eq.s32.totalorder %s17, 0
      %p189 = por %p187, %p188
      %p190 = scmp.ne.s32.totalorder %s182, %s184
      %p191 = scmp.eq.s32.totalorder %s22, 1
      %p192 = por %p190, %p191
      %p193 = scmp.ne.s32.totalorder %s184, %s185
      %p194 = scmp.eq.s32.totalorder %s22, 0
      %p195 = por %p193, %p194
      %p196 = scmp.ne.s32.totalorder %s184, %s185
      %p197 = scmp.eq.s32.totalorder %s23, 1
      %p198 = por %p196, %p197
      %p200 = scmp.ne.s32.totalorder %s185, %s199
      %p201 = scmp.eq.s32.totalorder %s23, 0
      %p202 = por %p200, %p201
      %s203 = ssub.s32 %s17, %s24
      %p204 = scmp.eq.s32.totalorder %s203, 0
      %s206 = sadd.s32 %s205, 1
      %s207 = scalar_select %p204, %s205, %s206
      %p210 = pneg %p204
      %p211 = scmp.eq.s32.totalorder %s17, 1
      %p212 = por %p210, %p211
      %p213 = scmp.ne.s32.totalorder %s205, %s208
      %p214 = scmp.eq.s32.totalorder %s17, 0
      %p215 = por %p213, %p214
      %p216 = scmp.ne.s32.totalorder %s205, %s208
      %p217 = scmp.eq.s32.totalorder %s22, 1
      %p218 = por %p216, %p217
      %p219 = scmp.ne.s32.totalorder %s208, %s209
      %p220 = scmp.eq.s32.totalorder %s22, 0
      %p221 = por %p219, %p220
      %p222 = scmp.ne.s32.totalorder %s208, %s209
      %p223 = scmp.eq.s32.totalorder %s23, 1
      %p224 = por %p222, %p223
      %p226 = scmp.ne.s32.totalorder %s209, %s225
      %p227 = scmp.eq.s32.totalorder %s23, 0
      %p228 = por %p226, %p227
      %p229 = scmp.le.s32.totalorder 1, %s17
      %p230 = scmp.lt.s32.totalorder %s17, 3
      %p231 = pnand %p229, %p230
      %p232 = pneg %p231
      // Predicated region
      $region9: #{attention_forward.1} parent=5 // pred_check
        _
      $region10: #{attention_forward.1} parent=5 // pred_check_branch
        %234 = sbr.rel (%p231) target = $region12
      $region11: #{attention_forward.1} parent=5 // pred_region
        %s235 = ssub.s32 %s17, 1
        // Predicated region
        $region13: #{attention_forward.1} parent=11 // pred_check
          %p236 = pneg %p90
        $region14: #{attention_forward.1} parent=11 // pred_check_branch
          %238 = sbr.rel (%p236) target = $region16
        $region15: #{attention_forward.1} parent=11 // pred_region
          _
        $region16: #{attention_forward.1} parent=11 // pred_fallthru
          _
        // Predicated region
        $region17: #{attention_forward.1} parent=11 // pred_check
          %p239 = pneg %p111
        $region18: #{attention_forward.1} parent=11 // pred_check_branch
          %241 = sbr.rel (%p239) target = $region20
        $region19: #{attention_forward.1} parent=11 // pred_region
          _
        $region20: #{attention_forward.1} parent=11 // pred_fallthru
          _
        // Predicated region
        $region21: #{attention_forward.1} parent=11 // pred_check
          %p242 = pneg %p132
        $region22: #{attention_forward.1} parent=11 // pred_check_branch
          %244 = sbr.rel (%p242) target = $region24
        $region23: #{attention_forward.1} parent=11 // pred_region
          _
        $region24: #{attention_forward.1} parent=11 // pred_fallthru
          _
        // Predicated region
        $region25: #{attention_forward.1} parent=11 // pred_check
          %p245 = pneg %p153
        $region26: #{attention_forward.1} parent=11 // pred_check_branch
          %247 = sbr.rel (%p245) target = $region28
        $region27: #{attention_forward.1} parent=11 // pred_region
          _
        $region28: #{attention_forward.1} parent=11 // pred_fallthru
          _
        // Predicated region
        $region29: #{attention_forward.1} parent=11 // pred_check
          %p248 = pneg %p174
        $region30: #{attention_forward.1} parent=11 // pred_check_branch
          %250 = sbr.rel (%p248) target = $region32
        $region31: #{attention_forward.1} parent=11 // pred_region
          _
        $region32: #{attention_forward.1} parent=11 // pred_fallthru
          _
        // Predicated region
        $region33: #{attention_forward.1} parent=11 // pred_check
          %p251 = pneg %p195
        $region34: #{attention_forward.1} parent=11 // pred_check_branch
          %253 = sbr.rel (%p251) target = $region36
        $region35: #{attention_forward.1} parent=11 // pred_region
          _
        $region36: #{attention_forward.1} parent=11 // pred_fallthru
          _
      $region12: #{attention_forward.1} parent=5 // pred_fallthru
        _
      %p254 = scmp.lt.s32.totalorder %s17, 2
      // Predicated region
      $region37: #{attention_forward.1} parent=5 // pred_check
        %p255 = pneg %p254
      $region38: #{attention_forward.1} parent=5 // pred_check_branch
        %257 = sbr.rel (%p255) target = $region40
      $region39: #{attention_forward.1} parent=5 // pred_region
        // Predicated region
        $region41: #{attention_forward.1} parent=39 // pred_check
          %p258 = pneg %p37
        $region42: #{attention_forward.1} parent=39 // pred_check_branch
          %260 = sbr.rel (%p258) target = $region44
        $region43: #{attention_forward.1} parent=39 // pred_region
          %p261 = scmp.lt.s32.totalorder %s17, 1
          %s262 = scalar_select %p261, %s17, 1
          %s263 = smul.addr %s262, 8
          %s264 = scalar_lea.vmem %s0, %s263
        $region44: #{attention_forward.1} parent=39 // pred_fallthru
          _
        // Predicated region
        $region45: #{attention_forward.1} parent=39 // pred_check
          %p265 = pneg %p63
        $region46: #{attention_forward.1} parent=39 // pred_check_branch
          %267 = sbr.rel (%p265) target = $region48
        $region47: #{attention_forward.1} parent=39 // pred_region
          %p268 = scmp.lt.s32.totalorder %s17, 1
          %s269 = scalar_select %p268, %s17, 1
          %s270 = smul.addr %s269, 8
          %s271 = scalar_lea.vmem %s1, %s270
        $region48: #{attention_forward.1} parent=39 // pred_fallthru
          _
      $region40: #{attention_forward.1} parent=5 // pred_fallthru
        _
      %p272 = scmp.le.s32.totalorder 1, %s17
      %p273 = scmp.lt.s32.totalorder %s17, 3
      %p274 = pnand %p272, %p273
      %p275 = pneg %p274
      // Predicated region
      $region49: #{attention_forward.1} parent=5 // pred_check
        _
      $region50: #{attention_forward.1} parent=5 // pred_check_branch
        %277 = sbr.rel (%p274) target = $region52
      $region51: #{attention_forward.1} parent=5 // pred_region
        %s278 = ssub.s32 %s17, 1
        %p279 = scmp.lt.s32.totalorder %s22, 1
        %s280 = scalar_select %p279, %s22, 1
        %s281 = smul.addr %s280, 8
        %s282 = scalar_lea.vmem %s0, %s281
        %p283 = pneg %p43
        %p284 = pneg %p40
        %p285 = scmp.lt.s32.totalorder %s22, 1
        %s286 = scalar_select %p285, %s22, 1
        %s287 = smul.addr %s286, 8
        %s288 = scalar_lea.vmem %s1, %s287
        %p289 = pneg %p69
        %p290 = pneg %p66
        %p291 = pneg %p90
        %p292 = pneg %p87
        %p293 = pneg %p111
        %p294 = pneg %p108
        %p295 = pneg %p132
        %p296 = pneg %p129
        %p297 = pneg %p153
        %p298 = pneg %p150
        %p299 = pneg %p174
        %p300 = pneg %p171
        %p301 = pneg %p195
        %p302 = pneg %p192
        %p303 = pneg %p221
        %p304 = pneg %p218
        %s305 = sand.u32 %s208, 1
        %s306 = scalar_lea.sflag [#allocation3], %s305
        %s307 = sand.u32 %s208, 1
        %s308 = smul.addr %s307, 8
        %s309 = scalar_lea.vmem [#allocation2], %s308
        %p310 = scmp.lt.s32.totalorder %s22, 1
        %s311 = scalar_select %p310, %s22, 1
        %s312 = smul.addr %s311, 8
        %s313 = scalar_lea.vmem %s0, %s312
        %p314 = scmp.lt.s32.totalorder %s22, 1
        %s315 = scalar_select %p314, %s22, 1
        %s316 = smul.addr %s315, 8
        %s317 = scalar_lea.vmem %s1, %s316
        %v318 = vld [vmem:[%s313] sm:$0xff]
        %v319 = vld [vmem:[%s317] sm:$0xff]
        %v320 = vld [vmem:[%s2] sm:$0xff]
        %v321 = vld [vmem:[%s2 + $0x8] sm:$0xff]
        %v322 = vld [vmem:[%s2 + $0x10] sm:$0xff]
        %v323 = vld [vmem:[%s2 + $0x18] sm:$0xff]
        %v324 = vld [vmem:[%s3] sm:$0x1]
        %v326 = vlaneseq
        %v327 = vshrl.u32 %v326, 7
        %v328 = vsub.s32 0, %v327
        %v329 = vrot.slane %v324, %v328
        %vm331 = vcmask 261120
        %v333 = vsel %vm331, %v318, 0
        %335 = vmatprep.subr.mxu0 0.0
        %336 = vmatpush1.msra.mxu0 0.0
        %337 = vmatprep.subr.mxu0 0.0
        %338 = vmatpush1.msra.mxu0 0.0
        %339 = vmatprep.subr.mxu0 0.0
        %340 = vmatpush1.msra.mxu0 0.0
        %341 = vmatprep.subr.mxu0 0.0
        %342 = vmatpush1.msra.mxu0 0.0
        %343 = vmatprep.subr.mxu0 0.0
        %344 = vmatpush1.msra.mxu0 0.0
        %345 = vmatprep.subr.mxu0 0.0
        %346 = vmatpush1.msra.mxu0 0.0
        %347 = vmatprep.subr.mxu0 0.0
        %348 = vmatpush1.msra.mxu0 0.0
        %349 = vmatprep.subr.mxu0 0.0
        %350 = vmatpush1.msra.mxu0 0.0
        %351 = vmatprep.subr.mxu0 0.0
        %352 = vmatpush1.msra.mxu0 0.0
        %353 = vmatprep.subr.mxu0 0.0
        %354 = vmatpush1.msra.mxu0 0.0
        %355 = vmatprep.subr.mxu0 0.0
        %356 = vmatpush1.msra.mxu0 0.0
        %357 = vmatprep.subr.mxu0 0.0
        %358 = vmatpush1.msra.mxu0 0.0
        %359 = vmatprep.subr.mxu0 0.0
        %360 = vmatpush1.msra.mxu0 %v323
        %361 = vmatprep.subr.mxu0 0.0
        %362 = vmatpush1.msra.mxu0 %v322
        %363 = vmatprep.subr.mxu0 0.0
        %364 = vmatpush1.msra.mxu0 %v321
        %365 = vmatprep.subr.mxu0 0.0
        %366 = vmatpush1.msra.mxu0 %v320
        %367 = vmatprep.subr.mxu0 0.0
        %368 = vmatpush2.msra.mxu0 0.0
        %369 = vmatprep.subr.mxu0 0.0
        %370 = vmatpush2.msra.mxu0 0.0
        %371 = vmatprep.subr.mxu0 0.0
        %372 = vmatpush2.msra.mxu0 0.0
        %373 = vmatprep.subr.mxu0 0.0
        %374 = vmatpush2.msra.mxu0 0.0
        %375 = vmatprep.subr.mxu0 0.0
        %376 = vmatpush2.msra.mxu0 0.0
        %377 = vmatprep.subr.mxu0 0.0
        %378 = vmatpush2.msra.mxu0 0.0
        %379 = vmatprep.subr.mxu0 0.0
        %380 = vmatpush2.msra.mxu0 0.0
        %381 = vmatprep.subr.mxu0 0.0
        %382 = vmatpush2.msra.mxu0 0.0
        %383 = vmatprep.subr.mxu0 0.0
        %384 = vmatpush2.msra.mxu0 0.0
        %385 = vmatprep.subr.mxu0 0.0
        %386 = vmatpush2.msra.mxu0 0.0
        %387 = vmatprep.subr.mxu0 0.0
        %388 = vmatpush2.msra.mxu0 0.0
        %389 = vmatprep.subr.mxu0 0.0
        %390 = vmatpush2.msra.mxu0 0.0
        %391 = vmatprep.subr.mxu0 0.0
        %392 = vmatpush2.msra.mxu0 0.0
        %393 = vmatprep.subr.mxu0 0.0
        %394 = vmatpush2.msra.mxu0 0.0
        %395 = vmatprep.subr.mxu0 0.0
        %396 = vmatpush2.msra.mxu0 0.0
        %397 = vmatprep.subr.mxu0 0.0
        %398 = vmatpush2.msra.mxu0 0.0
        %399 = vmatprep.mubr.f32.mxu0 0.0
        %400 = vmatmul.mubr.f32.gmra.mxu0 %v333
        %v401 = vpop.f32.mrf.mxu0
        %v402 = vadd.f32 %v329, %v401
        %v403 = vpop.f32.mrf.mxu0
        %404 = vdwg.mxu0
        %v405 = vld [vmem:[%s4] sm:$0xff]
        %v406 = vld [vmem:[%s4 + $0x8] sm:$0xff]
        %v407 = vld [vmem:[%s4 + $0x10] sm:$0xff]
        %v408 = vld [vmem:[%s4 + $0x18] sm:$0xff]
        %v409 = vld [vmem:[%s5] sm:$0x1]
        %v411 = vlaneseq
        %v412 = vshrl.u32 %v411, 7
        %v413 = vsub.s32 0, %v412
        %v414 = vrot.slane %v409, %v413
        %v417 = vsel %vm331, %v319, 0
        %419 = vmatprep.subr.mxu0 0.0
        %420 = vmatpush1.msra.mxu0 0.0
        %421 = vmatprep.subr.mxu0 0.0
        %422 = vmatpush1.msra.mxu0 0.0
        %423 = vmatprep.subr.mxu0 0.0
        %424 = vmatpush1.msra.mxu0 0.0
        %425 = vmatprep.subr.mxu0 0.0
        %426 = vmatpush1.msra.mxu0 0.0
        %427 = vmatprep.subr.mxu0 0.0
        %428 = vmatpush1.msra.mxu0 0.0
        %429 = vmatprep.subr.mxu0 0.0
        %430 = vmatpush1.msra.mxu0 0.0
        %431 = vmatprep.subr.mxu0 0.0
        %432 = vmatpush1.msra.mxu0 0.0
        %433 = vmatprep.subr.mxu0 0.0
        %434 = vmatpush1.msra.mxu0 0.0
        %435 = vmatprep.subr.mxu0 0.0
        %436 = vmatpush1.msra.mxu0 0.0
        %437 = vmatprep.subr.mxu0 0.0
        %438 = vmatpush1.msra.mxu0 0.0
        %439 = vmatprep.subr.mxu0 0.0
        %440 = vmatpush1.msra.mxu0 0.0
        %441 = vmatprep.subr.mxu0 0.0
        %442 = vmatpush1.msra.mxu0 0.0
        %443 = vmatprep.subr.mxu0 0.0
        %444 = vmatpush1.msra.mxu0 %v408
        %445 = vmatprep.subr.mxu0 0.0
        %446 = vmatpush1.msra.mxu0 %v407
        %447 = vmatprep.subr.mxu0 0.0
        %448 = vmatpush1.msra.mxu0 %v406
        %449 = vmatprep.subr.mxu0 0.0
        %450 = vmatpush1.msra.mxu0 %v405
        %451 = vmatprep.subr.mxu0 0.0
        %452 = vmatpush2.msra.mxu0 0.0
        %453 = vmatprep.subr.mxu0 0.0
        %454 = vmatpush2.msra.mxu0 0.0
        %455 = vmatprep.subr.mxu0 0.0
        %456 = vmatpush2.msra.mxu0 0.0
        %457 = vmatprep.subr.mxu0 0.0
        %458 = vmatpush2.msra.mxu0 0.0
        %459 = vmatprep.subr.mxu0 0.0
        %460 = vmatpush2.msra.mxu0 0.0
        %461 = vmatprep.subr.mxu0 0.0
        %462 = vmatpush2.msra.mxu0 0.0
        %463 = vmatprep.subr.mxu0 0.0
        %464 = vmatpush2.msra.mxu0 0.0
        %465 = vmatprep.subr.mxu0 0.0
        %466 = vmatpush2.msra.mxu0 0.0
        %467 = vmatprep.subr.mxu0 0.0
        %468 = vmatpush2.msra.mxu0 0.0
        %469 = vmatprep.subr.mxu0 0.0
        %470 = vmatpush2.msra.mxu0 0.0
        %471 = vmatprep.subr.mxu0 0.0
        %472 = vmatpush2.msra.mxu0 0.0
        %473 = vmatprep.subr.mxu0 0.0
        %474 = vmatpush2.msra.mxu0 0.0
        %475 = vmatprep.subr.mxu0 0.0
        %476 = vmatpush2.msra.mxu0 0.0
        %477 = vmatprep.subr.mxu0 0.0
        %478 = vmatpush2.msra.mxu0 0.0
        %479 = vmatprep.subr.mxu0 0.0
        %480 = vmatpush2.msra.mxu0 0.0
        %481 = vmatprep.subr.mxu0 0.0
        %482 = vmatpush2.msra.mxu0 0.0
        %483 = vmatprep.mubr.f32.mxu0 0.0
        %484 = vmatmul.mubr.f32.gmra.mxu0 %v417
        %v485 = vpop.f32.mrf.mxu0
        %v486 = vadd.f32 %v414, %v485
        %v487 = vpop.f32.mrf.mxu0
        %488 = vdwg.mxu0
        %v489 = vmul.f32 %v402, 0.35355338
        %vm490 = vcmask 64512
        %v492 = vsel %vm490, %v489, 0
        %v495 = vsel %vm490, %v486, 0
        %497 = vmatprep.subr.mxu0 0.0
        %498 = vmatpush1.xpose.msra.mxu0 0.0
        %499 = vmatprep.subr.mxu0 0.0
        %500 = vmatpush1.xpose.msra.mxu0 0.0
        %501 = vmatprep.subr.mxu0 0.0
        %502 = vmatpush1.xpose.msra.mxu0 0.0
        %503 = vmatprep.subr.mxu0 0.0
        %504 = vmatpush1.xpose.msra.mxu0 0.0
        %505 = vmatprep.subr.mxu0 0.0
        %506 = vmatpush1.xpose.msra.mxu0 0.0
        %507 = vmatprep.subr.mxu0 0.0
        %508 = vmatpush1.xpose.msra.mxu0 0.0
        %509 = vmatprep.subr.mxu0 0.0
        %510 = vmatpush1.xpose.msra.mxu0 0.0
        %511 = vmatprep.subr.mxu0 0.0
        %512 = vmatpush1.xpose.msra.mxu0 0.0
        %513 = vmatprep.subr.mxu0 0.0
        %514 = vmatpush1.xpose.msra.mxu0 0.0
        %515 = vmatprep.subr.mxu0 0.0
        %516 = vmatpush1.xpose.msra.mxu0 0.0
        %517 = vmatprep.subr.mxu0 0.0
        %518 = vmatpush1.xpose.msra.mxu0 0.0
        %519 = vmatprep.subr.mxu0 0.0
        %520 = vmatpush1.xpose.msra.mxu0 0.0
        %521 = vmatprep.subr.mxu0 0.0
        %522 = vmatpush1.xpose.msra.mxu0 0.0
        %523 = vmatprep.subr.mxu0 0.0
        %524 = vmatpush1.xpose.msra.mxu0 0.0
        %525 = vmatprep.subr.mxu0 0.0
        %526 = vmatpush1.xpose.msra.mxu0 0.0
        %527 = vmatprep.subr.mxu0 0.0
        %528 = vmatpush1.xpose.msra.mxu0 %v495
        %529 = vmatprep.subr.mxu0 0.0
        %530 = vmatpush2.xpose.msra.mxu0 0.0
        %531 = vmatprep.subr.mxu0 0.0
        %532 = vmatpush2.xpose.msra.mxu0 0.0
        %533 = vmatprep.subr.mxu0 0.0
        %534 = vmatpush2.xpose.msra.mxu0 0.0
        %535 = vmatprep.subr.mxu0 0.0
        %536 = vmatpush2.xpose.msra.mxu0 0.0
        %537 = vmatprep.subr.mxu0 0.0
        %538 = vmatpush2.xpose.msra.mxu0 0.0
        %539 = vmatprep.subr.mxu0 0.0
        %540 = vmatpush2.xpose.msra.mxu0 0.0
        %541 = vmatprep.subr.mxu0 0.0
        %542 = vmatpush2.xpose.msra.mxu0 0.0
        %543 = vmatprep.subr.mxu0 0.0
        %544 = vmatpush2.xpose.msra.mxu0 0.0
        %545 = vmatprep.subr.mxu0 0.0
        %546 = vmatpush2.xpose.msra.mxu0 0.0
        %547 = vmatprep.subr.mxu0 0.0
        %548 = vmatpush2.xpose.msra.mxu0 0.0
        %549 = vmatprep.subr.mxu0 0.0
        %550 = vmatpush2.xpose.msra.mxu0 0.0
        %551 = vmatprep.subr.mxu0 0.0
        %552 = vmatpush2.xpose.msra.mxu0 0.0
        %553 = vmatprep.subr.mxu0 0.0
        %554 = vmatpush2.xpose.msra.mxu0 0.0
        %555 = vmatprep.subr.mxu0 0.0
        %556 = vmatpush2.xpose.msra.mxu0 0.0
        %557 = vmatprep.subr.mxu0 0.0
        %558 = vmatpush2.xpose.msra.mxu0 0.0
        %559 = vmatprep.subr.mxu0 0.0
        %560 = vmatpush2.xpose.msra.mxu0 0.0
        %561 = vmatprep.mubr.f32.mxu0 0.0
        %562 = vmatmul.mubr.f32.gmra.mxu0 %v492
        %v563 = vpop.f32.mrf.mxu0
        %v564 = vadd.f32 0.0, %v563
        %v565 = vpop.f32.mrf.mxu0
        %566 = vdwg.mxu0
        %v567 = vsel %vm490, %v564, -inf
        %568 = vmax.xlane.f32.xlu0 %v567
        %v569 = vpop.xlane.xlu0 %568
        %v570 = vsub.f32 %v564, %v569
        %v571 = vmul.f32 %v570, 1.442695
        %v572 = vpow.pop %v571
        %v573 = vsel %vm490, %v572, 0.0
        %574 = vadd.xlane.f32.xlu0 %v573
        %v575 = vpop.xlane.xlu0 %574
        %576 = vrot.lane.b32.xlu0 %v486, 96
        %v577 = vpop.permute.xlu0 %576
        %v580 = vsel %vm490, %v572, 0
        %582 = vmatprep.subr.mxu0 0.0
        %583 = vmatpush1.msra.mxu0 0.0
        %584 = vmatprep.subr.mxu0 0.0
        %585 = vmatpush1.msra.mxu0 0.0
        %586 = vmatprep.subr.mxu0 0.0
        %587 = vmatpush1.msra.mxu0 0.0
        %588 = vmatprep.subr.mxu0 0.0
        %589 = vmatpush1.msra.mxu0 0.0
        %590 = vmatprep.subr.mxu0 0.0
        %591 = vmatpush1.msra.mxu0 0.0
        %592 = vmatprep.subr.mxu0 0.0
        %593 = vmatpush1.msra.mxu0 0.0
        %594 = vmatprep.subr.mxu0 0.0
        %595 = vmatpush1.msra.mxu0 0.0
        %596 = vmatprep.subr.mxu0 0.0
        %597 = vmatpush1.msra.mxu0 0.0
        %598 = vmatprep.subr.mxu0 0.0
        %599 = vmatpush1.msra.mxu0 0.0
        %600 = vmatprep.subr.mxu0 0.0
        %601 = vmatpush1.msra.mxu0 0.0
        %602 = vmatprep.subr.mxu0 0.0
        %603 = vmatpush1.msra.mxu0 0.0
        %604 = vmatprep.subr.mxu0 0.0
        %605 = vmatpush1.msra.mxu0 0.0
        %606 = vmatprep.subr.mxu0 0.0
        %607 = vmatpush1.msra.mxu0 0.0
        %608 = vmatprep.subr.mxu0 0.0
        %609 = vmatpush1.msra.mxu0 0.0
        %610 = vmatprep.subr.mxu0 0.0
        %611 = vmatpush1.msra.mxu0 0.0
        %612 = vmatprep.subr.mxu0 0.0
        %613 = vmatpush1.msra.mxu0 %v577
        %614 = vmatprep.subr.mxu0 0.0
        %615 = vmatpush2.msra.mxu0 0.0
        %616 = vmatprep.subr.mxu0 0.0
        %617 = vmatpush2.msra.mxu0 0.0
        %618 = vmatprep.subr.mxu0 0.0
        %619 = vmatpush2.msra.mxu0 0.0
        %620 = vmatprep.subr.mxu0 0.0
        %621 = vmatpush2.msra.mxu0 0.0
        %622 = vmatprep.subr.mxu0 0.0
        %623 = vmatpush2.msra.mxu0 0.0
        %624 = vmatprep.subr.mxu0 0.0
        %625 = vmatpush2.msra.mxu0 0.0
        %626 = vmatprep.subr.mxu0 0.0
        %627 = vmatpush2.msra.mxu0 0.0
        %628 = vmatprep.subr.mxu0 0.0
        %629 = vmatpush2.msra.mxu0 0.0
        %630 = vmatprep.subr.mxu0 0.0
        %631 = vmatpush2.msra.mxu0 0.0
        %632 = vmatprep.subr.mxu0 0.0
        %633 = vmatpush2.msra.mxu0 0.0
        %634 = vmatprep.subr.mxu0 0.0
        %635 = vmatpush2.msra.mxu0 0.0
        %636 = vmatprep.subr.mxu0 0.0
        %637 = vmatpush2.msra.mxu0 0.0
        %638 = vmatprep.subr.mxu0 0.0
        %639 = vmatpush2.msra.mxu0 0.0
        %640 = vmatprep.subr.mxu0 0.0
        %641 = vmatpush2.msra.mxu0 0.0
        %642 = vmatprep.subr.mxu0 0.0
        %643 = vmatpush2.msra.mxu0 0.0
        %644 = vmatprep.subr.mxu0 0.0
        %645 = vmatpush2.msra.mxu0 0.0
        %646 = vmatprep.mubr.f32.mxu0 0.0
        %647 = vmatmul.mubr.f32.gmra.mxu0 %v580
        %v648 = vpop.f32.mrf.mxu0
        %v649 = vadd.f32 0.0, %v648
        %v650 = vpop.f32.mrf.mxu0
        %651 = vdwg.mxu0
        %v652 = vrcp.pop %v575
        %v653 = vmul.f32 %v649, %v652
        %v654 = vld [vmem:[%s6] sm:$0xff]
        %655 = vrot.lane.b32.xlu0 %v489, 120
        %v656 = vpop.permute.xlu0 %655
        %657 = vrot.lane.b32.xlu0 %v486, 120
        %v658 = vpop.permute.xlu0 %657
        %v659 = vsel %vm490, %v656, 0
        %v661 = vsel %vm490, %v658, 0
        %663 = vmatprep.subr.mxu0 0.0
        %664 = vmatpush1.xpose.msra.mxu0 0.0
        %665 = vmatprep.subr.mxu0 0.0
        %666 = vmatpush1.xpose.msra.mxu0 0.0
        %667 = vmatprep.subr.mxu0 0.0
        %668 = vmatpush1.xpose.msra.mxu0 0.0
        %669 = vmatprep.subr.mxu0 0.0
        %670 = vmatpush1.xpose.msra.mxu0 0.0
        %671 = vmatprep.subr.mxu0 0.0
        %672 = vmatpush1.xpose.msra.mxu0 0.0
        %673 = vmatprep.subr.mxu0 0.0
        %674 = vmatpush1.xpose.msra.mxu0 0.0
        %675 = vmatprep.subr.mxu0 0.0
        %676 = vmatpush1.xpose.msra.mxu0 0.0
        %677 = vmatprep.subr.mxu0 0.0
        %678 = vmatpush1.xpose.msra.mxu0 0.0
        %679 = vmatprep.subr.mxu0 0.0
        %680 = vmatpush1.xpose.msra.mxu0 0.0
        %681 = vmatprep.subr.mxu0 0.0
        %682 = vmatpush1.xpose.msra.mxu0 0.0
        %683 = vmatprep.subr.mxu0 0.0
        %684 = vmatpush1.xpose.msra.mxu0 0.0
        %685 = vmatprep.subr.mxu0 0.0
        %686 = vmatpush1.xpose.msra.mxu0 0.0
        %687 = vmatprep.subr.mxu0 0.0
        %688 = vmatpush1.xpose.msra.mxu0 0.0
        %689 = vmatprep.subr.mxu0 0.0
        %690 = vmatpush1.xpose.msra.mxu0 0.0
        %691 = vmatprep.subr.mxu0 0.0
        %692 = vmatpush1.xpose.msra.mxu0 0.0
        %693 = vmatprep.subr.mxu0 0.0
        %694 = vmatpush1.xpose.msra.mxu0 %v661
        %695 = vmatprep.subr.mxu0 0.0
        %696 = vmatpush2.xpose.msra.mxu0 0.0
        %697 = vmatprep.subr.mxu0 0.0
        %698 = vmatpush2.xpose.msra.mxu0 0.0
        %699 = vmatprep.subr.mxu0 0.0
        %700 = vmatpush2.xpose.msra.mxu0 0.0
        %701 = vmatprep.subr.mxu0 0.0
        %702 = vmatpush2.xpose.msra.mxu0 0.0
        %703 = vmatprep.subr.mxu0 0.0
        %704 = vmatpush2.xpose.msra.mxu0 0.0
        %705 = vmatprep.subr.mxu0 0.0
        %706 = vmatpush2.xpose.msra.mxu0 0.0
        %707 = vmatprep.subr.mxu0 0.0
        %708 = vmatpush2.xpose.msra.mxu0 0.0
        %709 = vmatprep.subr.mxu0 0.0
        %710 = vmatpush2.xpose.msra.mxu0 0.0
        %711 = vmatprep.subr.mxu0 0.0
        %712 = vmatpush2.xpose.msra.mxu0 0.0
        %713 = vmatprep.subr.mxu0 0.0
        %714 = vmatpush2.xpose.msra.mxu0 0.0
        %715 = vmatprep.subr.mxu0 0.0
        %716 = vmatpush2.xpose.msra.mxu0 0.0
        %717 = vmatprep.subr.mxu0 0.0
        %718 = vmatpush2.xpose.msra.mxu0 0.0
        %719 = vmatprep.subr.mxu0 0.0
        %720 = vmatpush2.xpose.msra.mxu0 0.0
        %721 = vmatprep.subr.mxu0 0.0
        %722 = vmatpush2.xpose.msra.mxu0 0.0
        %723 = vmatprep.subr.mxu0 0.0
        %724 = vmatpush2.xpose.msra.mxu0 0.0
        %725 = vmatprep.subr.mxu0 0.0
        %726 = vmatpush2.xpose.msra.mxu0 0.0
        %727 = vmatprep.mubr.f32.mxu0 0.0
        %728 = vmatmul.mubr.f32.gmra.mxu0 %v659
        %v729 = vpop.f32.mrf.mxu0
        %v730 = vadd.f32 0.0, %v729
        %v731 = vpop.f32.mrf.mxu0
        %732 = vdwg.mxu0
        %v733 = vsel %vm490, %v730, -inf
        %734 = vmax.xlane.f32.xlu0 %v733
        %v735 = vpop.xlane.xlu0 %734
        %v736 = vsub.f32 %v730, %v735
        %v737 = vmul.f32 %v736, 1.442695
        %v738 = vpow.pop %v737
        %v739 = vsel %vm490, %v738, 0.0
        %740 = vadd.xlane.f32.xlu0 %v739
        %v741 = vpop.xlane.xlu0 %740
        %742 = vrot.lane.b32.xlu0 %v486, 88
        %v743 = vpop.permute.xlu0 %742
        %v746 = vsel %vm490, %v738, 0
        %748 = vmatprep.subr.mxu0 0.0
        %749 = vmatpush1.msra.mxu0 0.0
        %750 = vmatprep.subr.mxu0 0.0
        %751 = vmatpush1.msra.mxu0 0.0
        %752 = vmatprep.subr.mxu0 0.0
        %753 = vmatpush1.msra.mxu0 0.0
        %754 = vmatprep.subr.mxu0 0.0
        %755 = vmatpush1.msra.mxu0 0.0
        %756 = vmatprep.subr.mxu0 0.0
        %757 = vmatpush1.msra.mxu0 0.0
        %758 = vmatprep.subr.mxu0 0.0
        %759 = vmatpush1.msra.mxu0 0.0
        %760 = vmatprep.subr.mxu0 0.0
        %761 = vmatpush1.msra.mxu0 0.0
        %762 = vmatprep.subr.mxu0 0.0
        %763 = vmatpush1.msra.mxu0 0.0
        %764 = vmatprep.subr.mxu0 0.0
        %765 = vmatpush1.msra.mxu0 0.0
        %766 = vmatprep.subr.mxu0 0.0
        %767 = vmatpush1.msra.mxu0 0.0
        %768 = vmatprep.subr.mxu0 0.0
        %769 = vmatpush1.msra.mxu0 0.0
        %770 = vmatprep.subr.mxu0 0.0
        %771 = vmatpush1.msra.mxu0 0.0
        %772 = vmatprep.subr.mxu0 0.0
        %773 = vmatpush1.msra.mxu0 0.0
        %774 = vmatprep.subr.mxu0 0.0
        %775 = vmatpush1.msra.mxu0 0.0
        %776 = vmatprep.subr.mxu0 0.0
        %777 = vmatpush1.msra.mxu0 0.0
        %778 = vmatprep.subr.mxu0 0.0
        %779 = vmatpush1.msra.mxu0 %v743
        %780 = vmatprep.subr.mxu0 0.0
        %781 = vmatpush2.msra.mxu0 0.0
        %782 = vmatprep.subr.mxu0 0.0
        %783 = vmatpush2.msra.mxu0 0.0
        %784 = vmatprep.subr.mxu0 0.0
        %785 = vmatpush2.msra.mxu0 0.0
        %786 = vmatprep.subr.mxu0 0.0
        %787 = vmatpush2.msra.mxu0 0.0
        %788 = vmatprep.subr.mxu0 0.0
        %789 = vmatpush2.msra.mxu0 0.0
        %790 = vmatprep.subr.mxu0 0.0
        %791 = vmatpush2.msra.mxu0 0.0
        %792 = vmatprep.subr.mxu0 0.0
        %793 = vmatpush2.msra.mxu0 0.0
        %794 = vmatprep.subr.mxu0 0.0
        %795 = vmatpush2.msra.mxu0 0.0
        %796 = vmatprep.subr.mxu0 0.0
        %797 = vmatpush2.msra.mxu0 0.0
        %798 = vmatprep.subr.mxu0 0.0
        %799 = vmatpush2.msra.mxu0 0.0
        %800 = vmatprep.subr.mxu0 0.0
        %801 = vmatpush2.msra.mxu0 0.0
        %802 = vmatprep.subr.mxu0 0.0
        %803 = vmatpush2.msra.mxu0 0.0
        %804 = vmatprep.subr.mxu0 0.0
        %805 = vmatpush2.msra.mxu0 0.0
        %806 = vmatprep.subr.mxu0 0.0
        %807 = vmatpush2.msra.mxu0 0.0
        %808 = vmatprep.subr.mxu0 0.0
        %809 = vmatpush2.msra.mxu0 0.0
        %810 = vmatprep.subr.mxu0 0.0
        %811 = vmatpush2.msra.mxu0 0.0
        %812 = vmatprep.mubr.f32.mxu0 0.0
        %813 = vmatmul.mubr.f32.gmra.mxu0 %v746
        %v814 = vpop.f32.mrf.mxu0
        %v815 = vadd.f32 0.0, %v814
        %v816 = vpop.f32.mrf.mxu0
        %817 = vdwg.mxu0
        %v818 = vrcp.pop %v741
        %v819 = vmul.f32 %v815, %v818
        %v820 = vld [vmem:[%s6 + $0x8] sm:$0xff]
        %v822 = vsel %vm490, %v819, 0
        %824 = vmatprep.subr.mxu0 0.0
        %825 = vmatpush1.msra.mxu0 0.0
        %826 = vmatprep.subr.mxu0 0.0
        %827 = vmatpush1.msra.mxu0 0.0
        %828 = vmatprep.subr.mxu0 0.0
        %829 = vmatpush1.msra.mxu0 0.0
        %830 = vmatprep.subr.mxu0 0.0
        %831 = vmatpush1.msra.mxu0 0.0
        %832 = vmatprep.subr.mxu0 0.0
        %833 = vmatpush1.msra.mxu0 0.0
        %834 = vmatprep.subr.mxu0 0.0
        %835 = vmatpush1.msra.mxu0 0.0
        %836 = vmatprep.subr.mxu0 0.0
        %837 = vmatpush1.msra.mxu0 0.0
        %838 = vmatprep.subr.mxu0 0.0
        %839 = vmatpush1.msra.mxu0 0.0
        %840 = vmatprep.subr.mxu0 0.0
        %841 = vmatpush1.msra.mxu0 0.0
        %842 = vmatprep.subr.mxu0 0.0
        %843 = vmatpush1.msra.mxu0 0.0
        %844 = vmatprep.subr.mxu0 0.0
        %845 = vmatpush1.msra.mxu0 0.0
        %846 = vmatprep.subr.mxu0 0.0
        %847 = vmatpush1.msra.mxu0 0.0
        %848 = vmatprep.subr.mxu0 0.0
        %849 = vmatpush1.msra.mxu0 0.0
        %850 = vmatprep.subr.mxu0 0.0
        %851 = vmatpush1.msra.mxu0 0.0
        %852 = vmatprep.subr.mxu0 0.0
        %853 = vmatpush1.msra.mxu0 0.0
        %854 = vmatprep.subr.mxu0 0.0
        %855 = vmatpush1.msra.mxu0 %v820
        %856 = vmatprep.subr.mxu0 0.0
        %857 = vmatpush2.msra.mxu0 0.0
        %858 = vmatprep.subr.mxu0 0.0
        %859 = vmatpush2.msra.mxu0 0.0
        %860 = vmatprep.subr.mxu0 0.0
        %861 = vmatpush2.msra.mxu0 0.0
        %862 = vmatprep.subr.mxu0 0.0
        %863 = vmatpush2.msra.mxu0 0.0
        %864 = vmatprep.subr.mxu0 0.0
        %865 = vmatpush2.msra.mxu0 0.0
        %866 = vmatprep.subr.mxu0 0.0
        %867 = vmatpush2.msra.mxu0 0.0
        %868 = vmatprep.subr.mxu0 0.0
        %869 = vmatpush2.msra.mxu0 0.0
        %870 = vmatprep.subr.mxu0 0.0
        %871 = vmatpush2.msra.mxu0 0.0
        %872 = vmatprep.subr.mxu0 0.0
        %873 = vmatpush2.msra.mxu0 0.0
        %874 = vmatprep.subr.mxu0 0.0
        %875 = vmatpush2.msra.mxu0 0.0
        %876 = vmatprep.subr.mxu0 0.0
        %877 = vmatpush2.msra.mxu0 0.0
        %878 = vmatprep.subr.mxu0 0.0
        %879 = vmatpush2.msra.mxu0 0.0
        %880 = vmatprep.subr.mxu0 0.0
        %881 = vmatpush2.msra.mxu0 0.0
        %882 = vmatprep.subr.mxu0 0.0
        %883 = vmatpush2.msra.mxu0 0.0
        %884 = vmatprep.subr.mxu0 0.0
        %885 = vmatpush2.msra.mxu0 0.0
        %886 = vmatprep.subr.mxu0 0.0
        %887 = vmatpush2.msra.mxu0 0.0
        %888 = vmatprep.mubr.f32.mxu0 0.0
        %889 = vmatmul.mubr.f32.gmra.mxu0 %v822
        %v890 = vpop.f32.mrf.mxu0
        %v891 = vadd.f32 0.0, %v890
        %v892 = vpop.f32.mrf.mxu0
        %893 = vdwg.mxu0
        %v895 = vsel %vm490, %v653, 0
        %897 = vmatprep.subr.mxu0 0.0
        %898 = vmatpush1.msra.mxu0 0.0
        %899 = vmatprep.subr.mxu0 0.0
        %900 = vmatpush1.msra.mxu0 0.0
        %901 = vmatprep.subr.mxu0 0.0
        %902 = vmatpush1.msra.mxu0 0.0
        %903 = vmatprep.subr.mxu0 0.0
        %904 = vmatpush1.msra.mxu0 0.0
        %905 = vmatprep.subr.mxu0 0.0
        %906 = vmatpush1.msra.mxu0 0.0
        %907 = vmatprep.subr.mxu0 0.0
        %908 = vmatpush1.msra.mxu0 0.0
        %909 = vmatprep.subr.mxu0 0.0
        %910 = vmatpush1.msra.mxu0 0.0
        %911 = vmatprep.subr.mxu0 0.0
        %912 = vmatpush1.msra.mxu0 0.0
        %913 = vmatprep.subr.mxu0 0.0
        %914 = vmatpush1.msra.mxu0 0.0
        %915 = vmatprep.subr.mxu0 0.0
        %916 = vmatpush1.msra.mxu0 0.0
        %917 = vmatprep.subr.mxu0 0.0
        %918 = vmatpush1.msra.mxu0 0.0
        %919 = vmatprep.subr.mxu0 0.0
        %920 = vmatpush1.msra.mxu0 0.0
        %921 = vmatprep.subr.mxu0 0.0
        %922 = vmatpush1.msra.mxu0 0.0
        %923 = vmatprep.subr.mxu0 0.0
        %924 = vmatpush1.msra.mxu0 0.0
        %925 = vmatprep.subr.mxu0 0.0
        %926 = vmatpush1.msra.mxu0 0.0
        %927 = vmatprep.subr.mxu0 0.0
        %928 = vmatpush1.msra.mxu0 %v654
        %929 = vmatprep.subr.mxu0 0.0
        %930 = vmatpush2.msra.mxu0 0.0
        %931 = vmatprep.subr.mxu0 0.0
        %932 = vmatpush2.msra.mxu0 0.0
        %933 = vmatprep.subr.mxu0 0.0
        %934 = vmatpush2.msra.mxu0 0.0
        %935 = vmatprep.subr.mxu0 0.0
        %936 = vmatpush2.msra.mxu0 0.0
        %937 = vmatprep.subr.mxu0 0.0
        %938 = vmatpush2.msra.mxu0 0.0
        %939 = vmatprep.subr.mxu0 0.0
        %940 = vmatpush2.msra.mxu0 0.0
        %941 = vmatprep.subr.mxu0 0.0
        %942 = vmatpush2.msra.mxu0 0.0
        %943 = vmatprep.subr.mxu0 0.0
        %944 = vmatpush2.msra.mxu0 0.0
        %945 = vmatprep.subr.mxu0 0.0
        %946 = vmatpush2.msra.mxu0 0.0
        %947 = vmatprep.subr.mxu0 0.0
        %948 = vmatpush2.msra.mxu0 0.0
        %949 = vmatprep.subr.mxu0 0.0
        %950 = vmatpush2.msra.mxu0 0.0
        %951 = vmatprep.subr.mxu0 0.0
        %952 = vmatpush2.msra.mxu0 0.0
        %953 = vmatprep.subr.mxu0 0.0
        %954 = vmatpush2.msra.mxu0 0.0
        %955 = vmatprep.subr.mxu0 0.0
        %956 = vmatpush2.msra.mxu0 0.0
        %957 = vmatprep.subr.mxu0 0.0
        %958 = vmatpush2.msra.mxu0 0.0
        %959 = vmatprep.subr.mxu0 0.0
        %960 = vmatpush2.msra.mxu0 0.0
        %961 = vmatprep.mubr.f32.mxu0 0.0
        %962 = vmatmul.mubr.f32.gmra.mxu0 %v895
        %v963 = vpop.f32.mrf.mxu0
        %v964 = vadd.f32 %v891, %v963
        %v965 = vpop.f32.mrf.mxu0
        %966 = vdwg.mxu0
        %967 = vrot.lane.b32.xlu0 %v489, 112
        %v968 = vpop.permute.xlu0 %967
        %969 = vrot.lane.b32.xlu0 %v486, 112
        %v970 = vpop.permute.xlu0 %969
        %v971 = vsel %vm490, %v968, 0
        %v973 = vsel %vm490, %v970, 0
        %975 = vmatprep.subr.mxu0 0.0
        %976 = vmatpush1.xpose.msra.mxu0 0.0
        %977 = vmatprep.subr.mxu0 0.0
        %978 = vmatpush1.xpose.msra.mxu0 0.0
        %979 = vmatprep.subr.mxu0 0.0
        %980 = vmatpush1.xpose.msra.mxu0 0.0
        %981 = vmatprep.subr.mxu0 0.0
        %982 = vmatpush1.xpose.msra.mxu0 0.0
        %983 = vmatprep.subr.mxu0 0.0
        %984 = vmatpush1.xpose.msra.mxu0 0.0
        %985 = vmatprep.subr.mxu0 0.0
        %986 = vmatpush1.xpose.msra.mxu0 0.0
        %987 = vmatprep.subr.mxu0 0.0
        %988 = vmatpush1.xpose.msra.mxu0 0.0
        %989 = vmatprep.subr.mxu0 0.0
        %990 = vmatpush1.xpose.msra.mxu0 0.0
        %991 = vmatprep.subr.mxu0 0.0
        %992 = vmatpush1.xpose.msra.mxu0 0.0
        %993 = vmatprep.subr.mxu0 0.0
        %994 = vmatpush1.xpose.msra.mxu0 0.0
        %995 = vmatprep.subr.mxu0 0.0
        %996 = vmatpush1.xpose.msra.mxu0 0.0
        %997 = vmatprep.subr.mxu0 0.0
        %998 = vmatpush1.xpose.msra.mxu0 0.0
        %999 = vmatprep.subr.mxu0 0.0
        %1000 = vmatpush1.xpose.msra.mxu0 0.0
        %1001 = vmatprep.subr.mxu0 0.0
        %1002 = vmatpush1.xpose.msra.mxu0 0.0
        %1003 = vmatprep.subr.mxu0 0.0
        %1004 = vmatpush1.xpose.msra.mxu0 0.0
        %1005 = vmatprep.subr.mxu0 0.0
        %1006 = vmatpush1.xpose.msra.mxu0 %v973
        %1007 = vmatprep.subr.mxu0 0.0
        %1008 = vmatpush2.xpose.msra.mxu0 0.0
        %1009 = vmatprep.subr.mxu0 0.0
        %1010 = vmatpush2.xpose.msra.mxu0 0.0
        %1011 = vmatprep.subr.mxu0 0.0
        %1012 = vmatpush2.xpose.msra.mxu0 0.0
        %1013 = vmatprep.subr.mxu0 0.0
        %1014 = vmatpush2.xpose.msra.mxu0 0.0
        %1015 = vmatprep.subr.mxu0 0.0
        %1016 = vmatpush2.xpose.msra.mxu0 0.0
        %1017 = vmatprep.subr.mxu0 0.0
        %1018 = vmatpush2.xpose.msra.mxu0 0.0
        %1019 = vmatprep.subr.mxu0 0.0
        %1020 = vmatpush2.xpose.msra.mxu0 0.0
        %1021 = vmatprep.subr.mxu0 0.0
        %1022 = vmatpush2.xpose.msra.mxu0 0.0
        %1023 = vmatprep.subr.mxu0 0.0
        %1024 = vmatpush2.xpose.msra.mxu0 0.0
        %1025 = vmatprep.subr.mxu0 0.0
        %1026 = vmatpush2.xpose.msra.mxu0 0.0
        %1027 = vmatprep.subr.mxu0 0.0
        %1028 = vmatpush2.xpose.msra.mxu0 0.0
        %1029 = vmatprep.subr.mxu0 0.0
        %1030 = vmatpush2.xpose.msra.mxu0 0.0
        %1031 = vmatprep.subr.mxu0 0.0
        %1032 = vmatpush2.xpose.msra.mxu0 0.0
        %1033 = vmatprep.subr.mxu0 0.0
        %1034 = vmatpush2.xpose.msra.mxu0 0.0
        %1035 = vmatprep.subr.mxu0 0.0
        %1036 = vmatpush2.xpose.msra.mxu0 0.0
        %1037 = vmatprep.subr.mxu0 0.0
        %1038 = vmatpush2.xpose.msra.mxu0 0.0
        %1039 = vmatprep.mubr.f32.mxu0 0.0
        %1040 = vmatmul.mubr.f32.gmra.mxu0 %v971
        %v1041 = vpop.f32.mrf.mxu0
        %v1042 = vadd.f32 0.0, %v1041
        %v1043 = vpop.f32.mrf.mxu0
        %1044 = vdwg.mxu0
        %v1045 = vsel %vm490, %v1042, -inf
        %1046 = vmax.xlane.f32.xlu0 %v1045
        %v1047 = vpop.xlane.xlu0 %1046
        %v1048 = vsub.f32 %v1042, %v1047
        %v1049 = vmul.f32 %v1048, 1.442695
        %v1050 = vpow.pop %v1049
        %v1051 = vsel %vm490, %v1050, 0.0
        %1052 = vadd.xlane.f32.xlu0 %v1051
        %v1053 = vpop.xlane.xlu0 %1052
        %1054 = vrot.lane.b32.xlu0 %v486, 80
        %v1055 = vpop.permute.xlu0 %1054
        %v1058 = vsel %vm490, %v1050, 0
        %1060 = vmatprep.subr.mxu0 0.0
        %1061 = vmatpush1.msra.mxu0 0.0
        %1062 = vmatprep.subr.mxu0 0.0
        %1063 = vmatpush1.msra.mxu0 0.0
        %1064 = vmatprep.subr.mxu0 0.0
        %1065 = vmatpush1.msra.mxu0 0.0
        %1066 = vmatprep.subr.mxu0 0.0
        %1067 = vmatpush1.msra.mxu0 0.0
        %1068 = vmatprep.subr.mxu0 0.0
        %1069 = vmatpush1.msra.mxu0 0.0
        %1070 = vmatprep.subr.mxu0 0.0
        %1071 = vmatpush1.msra.mxu0 0.0
        %1072 = vmatprep.subr.mxu0 0.0
        %1073 = vmatpush1.msra.mxu0 0.0
        %1074 = vmatprep.subr.mxu0 0.0
        %1075 = vmatpush1.msra.mxu0 0.0
        %1076 = vmatprep.subr.mxu0 0.0
        %1077 = vmatpush1.msra.mxu0 0.0
        %1078 = vmatprep.subr.mxu0 0.0
        %1079 = vmatpush1.msra.mxu0 0.0
        %1080 = vmatprep.subr.mxu0 0.0
        %1081 = vmatpush1.msra.mxu0 0.0
        %1082 = vmatprep.subr.mxu0 0.0
        %1083 = vmatpush1.msra.mxu0 0.0
        %1084 = vmatprep.subr.mxu0 0.0
        %1085 = vmatpush1.msra.mxu0 0.0
        %1086 = vmatprep.subr.mxu0 0.0
        %1087 = vmatpush1.msra.mxu0 0.0
        %1088 = vmatprep.subr.mxu0 0.0
        %1089 = vmatpush1.msra.mxu0 0.0
        %1090 = vmatprep.subr.mxu0 0.0
        %1091 = vmatpush1.msra.mxu0 %v1055
        %1092 = vmatprep.subr.mxu0 0.0
        %1093 = vmatpush2.msra.mxu0 0.0
        %1094 = vmatprep.subr.mxu0 0.0
        %1095 = vmatpush2.msra.mxu0 0.0
        %1096 = vmatprep.subr.mxu0 0.0
        %1097 = vmatpush2.msra.mxu0 0.0
        %1098 = vmatprep.subr.mxu0 0.0
        %1099 = vmatpush2.msra.mxu0 0.0
        %1100 = vmatprep.subr.mxu0 0.0
        %1101 = vmatpush2.msra.mxu0 0.0
        %1102 = vmatprep.subr.mxu0 0.0
        %1103 = vmatpush2.msra.mxu0 0.0
        %1104 = vmatprep.subr.mxu0 0.0
        %1105 = vmatpush2.msra.mxu0 0.0
        %1106 = vmatprep.subr.mxu0 0.0
        %1107 = vmatpush2.msra.mxu0 0.0
        %1108 = vmatprep.subr.mxu0 0.0
        %1109 = vmatpush2.msra.mxu0 0.0
        %1110 = vmatprep.subr.mxu0 0.0
        %1111 = vmatpush2.msra.mxu0 0.0
        %1112 = vmatprep.subr.mxu0 0.0
        %1113 = vmatpush2.msra.mxu0 0.0
        %1114 = vmatprep.subr.mxu0 0.0
        %1115 = vmatpush2.msra.mxu0 0.0
        %1116 = vmatprep.subr.mxu0 0.0
        %1117 = vmatpush2.msra.mxu0 0.0
        %1118 = vmatprep.subr.mxu0 0.0
        %1119 = vmatpush2.msra.mxu0 0.0
        %1120 = vmatprep.subr.mxu0 0.0
        %1121 = vmatpush2.msra.mxu0 0.0
        %1122 = vmatprep.subr.mxu0 0.0
        %1123 = vmatpush2.msra.mxu0 0.0
        %1124 = vmatprep.mubr.f32.mxu0 0.0
        %1125 = vmatmul.mubr.f32.gmra.mxu0 %v1058
        %v1126 = vpop.f32.mrf.mxu0
        %v1127 = vadd.f32 0.0, %v1126
        %v1128 = vpop.f32.mrf.mxu0
        %1129 = vdwg.mxu0
        %v1130 = vrcp.pop %v1053
        %v1131 = vmul.f32 %v1127, %v1130
        %v1132 = vld [vmem:[%s6 + $0x10] sm:$0xff]
        %v1134 = vsel %vm490, %v1131, 0
        %1136 = vmatprep.subr.mxu0 0.0
        %1137 = vmatpush1.msra.mxu0 0.0
        %1138 = vmatprep.subr.mxu0 0.0
        %1139 = vmatpush1.msra.mxu0 0.0
        %1140 = vmatprep.subr.mxu0 0.0
        %1141 = vmatpush1.msra.mxu0 0.0
        %1142 = vmatprep.subr.mxu0 0.0
        %1143 = vmatpush1.msra.mxu0 0.0
        %1144 = vmatprep.subr.mxu0 0.0
        %1145 = vmatpush1.msra.mxu0 0.0
        %1146 = vmatprep.subr.mxu0 0.0
        %1147 = vmatpush1.msra.mxu0 0.0
        %1148 = vmatprep.subr.mxu0 0.0
        %1149 = vmatpush1.msra.mxu0 0.0
        %1150 = vmatprep.subr.mxu0 0.0
        %1151 = vmatpush1.msra.mxu0 0.0
        %1152 = vmatprep.subr.mxu0 0.0
        %1153 = vmatpush1.msra.mxu0 0.0
        %1154 = vmatprep.subr.mxu0 0.0
        %1155 = vmatpush1.msra.mxu0 0.0
        %1156 = vmatprep.subr.mxu0 0.0
        %1157 = vmatpush1.msra.mxu0 0.0
        %1158 = vmatprep.subr.mxu0 0.0
        %1159 = vmatpush1.msra.mxu0 0.0
        %1160 = vmatprep.subr.mxu0 0.0
        %1161 = vmatpush1.msra.mxu0 0.0
        %1162 = vmatprep.subr.mxu0 0.0
        %1163 = vmatpush1.msra.mxu0 0.0
        %1164 = vmatprep.subr.mxu0 0.0
        %1165 = vmatpush1.msra.mxu0 0.0
        %1166 = vmatprep.subr.mxu0 0.0
        %1167 = vmatpush1.msra.mxu0 %v1132
        %1168 = vmatprep.subr.mxu0 0.0
        %1169 = vmatpush2.msra.mxu0 0.0
        %1170 = vmatprep.subr.mxu0 0.0
        %1171 = vmatpush2.msra.mxu0 0.0
        %1172 = vmatprep.subr.mxu0 0.0
        %1173 = vmatpush2.msra.mxu0 0.0
        %1174 = vmatprep.subr.mxu0 0.0
        %1175 = vmatpush2.msra.mxu0 0.0
        %1176 = vmatprep.subr.mxu0 0.0
        %1177 = vmatpush2.msra.mxu0 0.0
        %1178 = vmatprep.subr.mxu0 0.0
        %1179 = vmatpush2.msra.mxu0 0.0
        %1180 = vmatprep.subr.mxu0 0.0
        %1181 = vmatpush2.msra.mxu0 0.0
        %1182 = vmatprep.subr.mxu0 0.0
        %1183 = vmatpush2.msra.mxu0 0.0
        %1184 = vmatprep.subr.mxu0 0.0
        %1185 = vmatpush2.msra.mxu0 0.0
        %1186 = vmatprep.subr.mxu0 0.0
        %1187 = vmatpush2.msra.mxu0 0.0
        %1188 = vmatprep.subr.mxu0 0.0
        %1189 = vmatpush2.msra.mxu0 0.0
        %1190 = vmatprep.subr.mxu0 0.0
        %1191 = vmatpush2.msra.mxu0 0.0
        %1192 = vmatprep.subr.mxu0 0.0
        %1193 = vmatpush2.msra.mxu0 0.0
        %1194 = vmatprep.subr.mxu0 0.0
        %1195 = vmatpush2.msra.mxu0 0.0
        %1196 = vmatprep.subr.mxu0 0.0
        %1197 = vmatpush2.msra.mxu0 0.0
        %1198 = vmatprep.subr.mxu0 0.0
        %1199 = vmatpush2.msra.mxu0 0.0
        %1200 = vmatprep.mubr.f32.mxu0 0.0
        %1201 = vmatmul.mubr.f32.gmra.mxu0 %v1134
        %v1202 = vpop.f32.mrf.mxu0
        %v1203 = vadd.f32 0.0, %v1202
        %v1204 = vpop.f32.mrf.mxu0
        %1205 = vdwg.mxu0
        %v1206 = vadd.f32 %v964, %v1203
        %1207 = vrot.lane.b32.xlu0 %v489, 104
        %v1208 = vpop.permute.xlu0 %1207
        %1209 = vrot.lane.b32.xlu0 %v486, 104
        %v1210 = vpop.permute.xlu0 %1209
        %v1211 = vsel %vm490, %v1208, 0
        %v1213 = vsel %vm490, %v1210, 0
        %1215 = vmatprep.subr.mxu0 0.0
        %1216 = vmatpush1.xpose.msra.mxu0 0.0
        %1217 = vmatprep.subr.mxu0 0.0
        %1218 = vmatpush1.xpose.msra.mxu0 0.0
        %1219 = vmatprep.subr.mxu0 0.0
        %1220 = vmatpush1.xpose.msra.mxu0 0.0
        %1221 = vmatprep.subr.mxu0 0.0
        %1222 = vmatpush1.xpose.msra.mxu0 0.0
        %1223 = vmatprep.subr.mxu0 0.0
        %1224 = vmatpush1.xpose.msra.mxu0 0.0
        %1225 = vmatprep.subr.mxu0 0.0
        %1226 = vmatpush1.xpose.msra.mxu0 0.0
        %1227 = vmatprep.subr.mxu0 0.0
        %1228 = vmatpush1.xpose.msra.mxu0 0.0
        %1229 = vmatprep.subr.mxu0 0.0
        %1230 = vmatpush1.xpose.msra.mxu0 0.0
        %1231 = vmatprep.subr.mxu0 0.0
        %1232 = vmatpush1.xpose.msra.mxu0 0.0
        %1233 = vmatprep.subr.mxu0 0.0
        %1234 = vmatpush1.xpose.msra.mxu0 0.0
        %1235 = vmatprep.subr.mxu0 0.0
        %1236 = vmatpush1.xpose.msra.mxu0 0.0
        %1237 = vmatprep.subr.mxu0 0.0
        %1238 = vmatpush1.xpose.msra.mxu0 0.0
        %1239 = vmatprep.subr.mxu0 0.0
        %1240 = vmatpush1.xpose.msra.mxu0 0.0
        %1241 = vmatprep.subr.mxu0 0.0
        %1242 = vmatpush1.xpose.msra.mxu0 0.0
        %1243 = vmatprep.subr.mxu0 0.0
        %1244 = vmatpush1.xpose.msra.mxu0 0.0
        %1245 = vmatprep.subr.mxu0 0.0
        %1246 = vmatpush1.xpose.msra.mxu0 %v1213
        %1247 = vmatprep.subr.mxu0 0.0
        %1248 = vmatpush2.xpose.msra.mxu0 0.0
        %1249 = vmatprep.subr.mxu0 0.0
        %1250 = vmatpush2.xpose.msra.mxu0 0.0
        %1251 = vmatprep.subr.mxu0 0.0
        %1252 = vmatpush2.xpose.msra.mxu0 0.0
        %1253 = vmatprep.subr.mxu0 0.0
        %1254 = vmatpush2.xpose.msra.mxu0 0.0
        %1255 = vmatprep.subr.mxu0 0.0
        %1256 = vmatpush2.xpose.msra.mxu0 0.0
        %1257 = vmatprep.subr.mxu0 0.0
        %1258 = vmatpush2.xpose.msra.mxu0 0.0
        %1259 = vmatprep.subr.mxu0 0.0
        %1260 = vmatpush2.xpose.msra.mxu0 0.0
        %1261 = vmatprep.subr.mxu0 0.0
        %1262 = vmatpush2.xpose.msra.mxu0 0.0
        %1263 = vmatprep.subr.mxu0 0.0
        %1264 = vmatpush2.xpose.msra.mxu0 0.0
        %1265 = vmatprep.subr.mxu0 0.0
        %1266 = vmatpush2.xpose.msra.mxu0 0.0
        %1267 = vmatprep.subr.mxu0 0.0
        %1268 = vmatpush2.xpose.msra.mxu0 0.0
        %1269 = vmatprep.subr.mxu0 0.0
        %1270 = vmatpush2.xpose.msra.mxu0 0.0
        %1271 = vmatprep.subr.mxu0 0.0
        %1272 = vmatpush2.xpose.msra.mxu0 0.0
        %1273 = vmatprep.subr.mxu0 0.0
        %1274 = vmatpush2.xpose.msra.mxu0 0.0
        %1275 = vmatprep.subr.mxu0 0.0
        %1276 = vmatpush2.xpose.msra.mxu0 0.0
        %1277 = vmatprep.subr.mxu0 0.0
        %1278 = vmatpush2.xpose.msra.mxu0 0.0
        %1279 = vmatprep.mubr.f32.mxu0 0.0
        %1280 = vmatmul.mubr.f32.gmra.mxu0 %v1211
        %v1281 = vpop.f32.mrf.mxu0
        %v1282 = vadd.f32 0.0, %v1281
        %v1283 = vpop.f32.mrf.mxu0
        %1284 = vdwg.mxu0
        %v1285 = vsel %vm490, %v1282, -inf
        %1286 = vmax.xlane.f32.xlu0 %v1285
        %v1287 = vpop.xlane.xlu0 %1286
        %v1288 = vsub.f32 %v1282, %v1287
        %v1289 = vmul.f32 %v1288, 1.442695
        %v1290 = vpow.pop %v1289
        %v1291 = vsel %vm490, %v1290, 0.0
        %1292 = vadd.xlane.f32.xlu0 %v1291
        %v1293 = vpop.xlane.xlu0 %1292
        %1294 = vrot.lane.b32.xlu0 %v486, 72
        %v1295 = vpop.permute.xlu0 %1294
        %v1298 = vsel %vm490, %v1290, 0
        %1300 = vmatprep.subr.mxu0 0.0
        %1301 = vmatpush1.msra.mxu0 0.0
        %1302 = vmatprep.subr.mxu0 0.0
        %1303 = vmatpush1.msra.mxu0 0.0
        %1304 = vmatprep.subr.mxu0 0.0
        %1305 = vmatpush1.msra.mxu0 0.0
        %1306 = vmatprep.subr.mxu0 0.0
        %1307 = vmatpush1.msra.mxu0 0.0
        %1308 = vmatprep.subr.mxu0 0.0
        %1309 = vmatpush1.msra.mxu0 0.0
        %1310 = vmatprep.subr.mxu0 0.0
        %1311 = vmatpush1.msra.mxu0 0.0
        %1312 = vmatprep.subr.mxu0 0.0
        %1313 = vmatpush1.msra.mxu0 0.0
        %1314 = vmatprep.subr.mxu0 0.0
        %1315 = vmatpush1.msra.mxu0 0.0
        %1316 = vmatprep.subr.mxu0 0.0
        %1317 = vmatpush1.msra.mxu0 0.0
        %1318 = vmatprep.subr.mxu0 0.0
        %1319 = vmatpush1.msra.mxu0 0.0
        %1320 = vmatprep.subr.mxu0 0.0
        %1321 = vmatpush1.msra.mxu0 0.0
        %1322 = vmatprep.subr.mxu0 0.0
        %1323 = vmatpush1.msra.mxu0 0.0
        %1324 = vmatprep.subr.mxu0 0.0
        %1325 = vmatpush1.msra.mxu0 0.0
        %1326 = vmatprep.subr.mxu0 0.0
        %1327 = vmatpush1.msra.mxu0 0.0
        %1328 = vmatprep.subr.mxu0 0.0
        %1329 = vmatpush1.msra.mxu0 0.0
        %1330 = vmatprep.subr.mxu0 0.0
        %1331 = vmatpush1.msra.mxu0 %v1295
        %1332 = vmatprep.subr.mxu0 0.0
        %1333 = vmatpush2.msra.mxu0 0.0
        %1334 = vmatprep.subr.mxu0 0.0
        %1335 = vmatpush2.msra.mxu0 0.0
        %1336 = vmatprep.subr.mxu0 0.0
        %1337 = vmatpush2.msra.mxu0 0.0
        %1338 = vmatprep.subr.mxu0 0.0
        %1339 = vmatpush2.msra.mxu0 0.0
        %1340 = vmatprep.subr.mxu0 0.0
        %1341 = vmatpush2.msra.mxu0 0.0
        %1342 = vmatprep.subr.mxu0 0.0
        %1343 = vmatpush2.msra.mxu0 0.0
        %1344 = vmatprep.subr.mxu0 0.0
        %1345 = vmatpush2.msra.mxu0 0.0
        %1346 = vmatprep.subr.mxu0 0.0
        %1347 = vmatpush2.msra.mxu0 0.0
        %1348 = vmatprep.subr.mxu0 0.0
        %1349 = vmatpush2.msra.mxu0 0.0
        %1350 = vmatprep.subr.mxu0 0.0
        %1351 = vmatpush2.msra.mxu0 0.0
        %1352 = vmatprep.subr.mxu0 0.0
        %1353 = vmatpush2.msra.mxu0 0.0
        %1354 = vmatprep.subr.mxu0 0.0
        %1355 = vmatpush2.msra.mxu0 0.0
        %1356 = vmatprep.subr.mxu0 0.0
        %1357 = vmatpush2.msra.mxu0 0.0
        %1358 = vmatprep.subr.mxu0 0.0
        %1359 = vmatpush2.msra.mxu0 0.0
        %1360 = vmatprep.subr.mxu0 0.0
        %1361 = vmatpush2.msra.mxu0 0.0
        %1362 = vmatprep.subr.mxu0 0.0
        %1363 = vmatpush2.msra.mxu0 0.0
        %1364 = vmatprep.mubr.f32.mxu0 0.0
        %1365 = vmatmul.mubr.f32.gmra.mxu0 %v1298
        %v1366 = vpop.f32.mrf.mxu0
        %v1367 = vadd.f32 0.0, %v1366
        %v1368 = vpop.f32.mrf.mxu0
        %1369 = vdwg.mxu0
        %v1370 = vrcp.pop %v1293
        %v1371 = vmul.f32 %v1367, %v1370
        %v1372 = vld [vmem:[%s6 + $0x18] sm:$0xff]
        %v1374 = vsel %vm490, %v1371, 0
        %1376 = vmatprep.subr.mxu0 0.0
        %1377 = vmatpush1.msra.mxu0 0.0
        %1378 = vmatprep.subr.mxu0 0.0
        %1379 = vmatpush1.msra.mxu0 0.0
        %1380 = vmatprep.subr.mxu0 0.0
        %1381 = vmatpush1.msra.mxu0 0.0
        %1382 = vmatprep.subr.mxu0 0.0
        %1383 = vmatpush1.msra.mxu0 0.0
        %1384 = vmatprep.subr.mxu0 0.0
        %1385 = vmatpush1.msra.mxu0 0.0
        %1386 = vmatprep.subr.mxu0 0.0
        %1387 = vmatpush1.msra.mxu0 0.0
        %1388 = vmatprep.subr.mxu0 0.0
        %1389 = vmatpush1.msra.mxu0 0.0
        %1390 = vmatprep.subr.mxu0 0.0
        %1391 = vmatpush1.msra.mxu0 0.0
        %1392 = vmatprep.subr.mxu0 0.0
        %1393 = vmatpush1.msra.mxu0 0.0
        %1394 = vmatprep.subr.mxu0 0.0
        %1395 = vmatpush1.msra.mxu0 0.0
        %1396 = vmatprep.subr.mxu0 0.0
        %1397 = vmatpush1.msra.mxu0 0.0
        %1398 = vmatprep.subr.mxu0 0.0
        %1399 = vmatpush1.msra.mxu0 0.0
        %1400 = vmatprep.subr.mxu0 0.0
        %1401 = vmatpush1.msra.mxu0 0.0
        %1402 = vmatprep.subr.mxu0 0.0
        %1403 = vmatpush1.msra.mxu0 0.0
        %1404 = vmatprep.subr.mxu0 0.0
        %1405 = vmatpush1.msra.mxu0 0.0
        %1406 = vmatprep.subr.mxu0 0.0
        %1407 = vmatpush1.msra.mxu0 %v1372
        %1408 = vmatprep.subr.mxu0 0.0
        %1409 = vmatpush2.msra.mxu0 0.0
        %1410 = vmatprep.subr.mxu0 0.0
        %1411 = vmatpush2.msra.mxu0 0.0
        %1412 = vmatprep.subr.mxu0 0.0
        %1413 = vmatpush2.msra.mxu0 0.0
        %1414 = vmatprep.subr.mxu0 0.0
        %1415 = vmatpush2.msra.mxu0 0.0
        %1416 = vmatprep.subr.mxu0 0.0
        %1417 = vmatpush2.msra.mxu0 0.0
        %1418 = vmatprep.subr.mxu0 0.0
        %1419 = vmatpush2.msra.mxu0 0.0
        %1420 = vmatprep.subr.mxu0 0.0
        %1421 = vmatpush2.msra.mxu0 0.0
        %1422 = vmatprep.subr.mxu0 0.0
        %1423 = vmatpush2.msra.mxu0 0.0
        %1424 = vmatprep.subr.mxu0 0.0
        %1425 = vmatpush2.msra.mxu0 0.0
        %1426 = vmatprep.subr.mxu0 0.0
        %1427 = vmatpush2.msra.mxu0 0.0
        %1428 = vmatprep.subr.mxu0 0.0
        %1429 = vmatpush2.msra.mxu0 0.0
        %1430 = vmatprep.subr.mxu0 0.0
        %1431 = vmatpush2.msra.mxu0 0.0
        %1432 = vmatprep.subr.mxu0 0.0
        %1433 = vmatpush2.msra.mxu0 0.0
        %1434 = vmatprep.subr.mxu0 0.0
        %1435 = vmatpush2.msra.mxu0 0.0
        %1436 = vmatprep.subr.mxu0 0.0
        %1437 = vmatpush2.msra.mxu0 0.0
        %1438 = vmatprep.subr.mxu0 0.0
        %1439 = vmatpush2.msra.mxu0 0.0
        %1440 = vmatprep.mubr.f32.mxu0 0.0
        %1441 = vmatmul.mubr.f32.gmra.mxu0 %v1374
        %v1442 = vpop.f32.mrf.mxu0
        %v1443 = vadd.f32 0.0, %v1442
        %v1444 = vpop.f32.mrf.mxu0
        %1445 = vdwg.mxu0
        %v1446 = vadd.f32 %v1206, %v1443
        %v1447 = vld [vmem:[%s7] sm:$0x1]
        %v1449 = vlaneseq
        %v1450 = vshrl.u32 %v1449, 7
        %v1451 = vsub.s32 0, %v1450
        %v1452 = vrot.slane %v1447, %v1451
        %v1454 = vadd.f32 %v1446, %v1452
        %1455 = vst.msk [vmem:[%s309] sm:$0xff] %vm331, %v1454
        %s1456 = sand.u32 %s208, 1
        %s1457 = scalar_lea.sflag [#allocation3], %s1456
        %s1458 = sand.u32 %s208, 1
        %s1459 = smul.addr %s1458, 8
        %s1460 = scalar_lea.vmem [#allocation2], %s1459
        // Predicated region
        $region53: #{attention_forward.1} parent=51 // pred_check
          %p1461 = pneg %p218
        $region54: #{attention_forward.1} parent=51 // pred_check_branch
          %1463 = sbr.rel (%p1461) target = $region56
        $region55: #{attention_forward.1} parent=51 // pred_region
          %s1465 = ssub.s32 128, 128
          %1466 = vsyncadd %s1457, %s1465
          %s1467 = smul.addr %s22, 128
          %s1468 = scalar_lea.hbm %s8, %s1467
          %s1470 = sshll.u32 %s1460, 4
          %s1471 = int_to_ptr.vmem [resolvable:$true] %s1470
          %1473 = dma.vmem_to_hbm [thread:$0]  %s1471, 128, %s1468, %s1457
        $region56: #{attention_forward.1} parent=51 // pred_fallthru
          _
      $region52: #{attention_forward.1} parent=5 // pred_fallthru
        _
      %p1474 = scmp.le.s32.totalorder 2, %s17
      // Predicated region
      $region57: #{attention_forward.1} parent=5 // pred_check
        %p1475 = pneg %p1474
      $region58: #{attention_forward.1} parent=5 // pred_check_branch
        %1477 = sbr.rel (%p1475) target = $region60
      $region59: #{attention_forward.1} parent=5 // pred_region
        %s1478 = ssub.s32 %s17, 2
        // Predicated region
        $region61: #{attention_forward.1} parent=59 // pred_check
          %p1479 = pneg %p224
        $region62: #{attention_forward.1} parent=59 // pred_check_branch
          %1481 = sbr.rel (%p1479) target = $region64
        $region63: #{attention_forward.1} parent=59 // pred_region
          %s1482 = sand.u32 %s209, 1
          %s1483 = scalar_lea.sflag [#allocation3], %s1482
          %s1484 = sand.u32 %s209, 1
          %s1485 = smul.addr %s1484, 8
          %s1486 = scalar_lea.vmem [#allocation2], %s1485
          %1487 = dma.done %s1483, 128
        $region64: #{attention_forward.1} parent=59 // pred_fallthru
          _
      $region60: #{attention_forward.1} parent=5 // pred_fallthru
        _
    $region6: #{attention_forward.1} parent=1 // loop_footer
      %s21 = sadd.s32 1, %s17
    $region7: #{attention_forward.1} parent=1 // loop_footer_branch
      %16 = sbr.rel target = $region3
    $region8: #{attention_forward.1} parent=1 // loop_exit
      _
    %1488 = vsyncpa [#allocation3], 1
    %s1489 = scalar_lea.sflag [#allocation3], 1
    %1490 = vsyncpa %s1489, 1

</llo_original>
